<compile_context>
chip_gen: v5e
topology: v5e:2x2
jax: 0.10.0
libtpu: 0.0.40
codegen_flags: <defaults>
</compile_context>

<pallas_src>
import math
import functools

import jax
import jax.numpy as jnp
from jax.experimental import pallas as pl
from jax.experimental.pallas import tpu as pltpu

BN_EPS = 1e-5
VMEM_BUDGET = 20 * 1024 * 1024   # per-kernel working-set budget (headroom < 32 MiB)


def _round_up(x, m):
    return (x + m - 1) // m * m


# ---------------------------------------------------------------------------
# Tile-size selection (shape-static, runs at trace time)
# ---------------------------------------------------------------------------
def _pick_tm(M, n_tiles_n):
    """Largest row tile (<=512) with modest padding waste; keep >=2 parallel
    output tiles when M can still be split (v7x has 2 TensorCores)."""
    Mp128 = _round_up(M, 128)
    best = 128
    for tm in (512, 384, 256, 128):
        if tm > Mp128:
            continue
        if _round_up(M, tm) - M > tm // 2:   # too much wasted row padding
            continue
        best = tm
        break
    if (_round_up(M, best) // best) * n_tiles_n < 2 and best > 128:
        best = max(128, best // 2)
        if best % 128:
            best = _round_up(best, 128)
    return best


def _pick_tk(Kp, tm, tn, res_bytes, out_bytes, budget=VMEM_BUDGET):
    """Largest 128-multiple divisor of Kp whose double-buffered working set
    fits the VMEM budget (usually the full K)."""
    q = Kp // 128
    for nk in range(1, q + 1):
        if q % nk:
            continue
        tk = Kp // nk
        vmem = (2 * (tm * tk * 2 + tk * tn * 2)      # bf16 patches + weights, 2 buffers
                + 2 * tn * 4                         # f32 bias row
                + 2 * tm * tn * res_bytes            # bf16 residual (if any)
                + 2 * tm * tn * out_bytes            # output window
                + tm * tn * 4)                       # f32 accumulator scratch
        if vmem <= budget:
            return tk
    return 128


# ---------------------------------------------------------------------------
# Pallas kernel: tiled fused matmul + BN-bias (+ residual) (+ ReLU)
# ---------------------------------------------------------------------------
def _fused_matmul_bias_act(patches, w2d, bias2d, residual=None, *,
                           relu=True, out_dtype=jnp.float32, tm, tn, tk):
    """out = [relu]( patches @ w2d + bias [+ residual] ).

    patches : (M, K)  bf16   (M % tm == 0, K % tk == 0)
    w2d     : (K, N)  bf16   (BN scale already folded into columns, N % tn == 0)
    bias2d  : (1, N)  f32
    residual: (M, N)  bf16 or None
    """
    M, K = patches.shape
    N = w2d.shape[1]
    assert M % tm == 0 and K % tk == 0 and N % tn == 0
    nk = K // tk
    has_res = residual is not None

    def kernel(*refs):
        if has_res:
            p_ref, w_ref, b_ref, r_ref, o_ref, acc_ref = refs
        else:
            p_ref, w_ref, b_ref, o_ref, acc_ref = refs
        k = pl.program_id(2)

        @pl.when(k == 0)
        def _():
            # BN bias folded into the accumulator init (saves a full-tile VPU
            # add + zeros store in the epilogue).
            acc_ref[...] = jnp.broadcast_to(b_ref[...], acc_ref.shape)

        acc_ref[...] += jnp.dot(p_ref[...], w_ref[...],
                                preferred_element_type=jnp.float32)

        @pl.when(k == nk - 1)
        def _():
            acc = acc_ref[...]
            if has_res:
                acc = acc + r_ref[...].astype(jnp.float32)   # residual in f32 acc
            if relu:
                acc = jnp.maximum(acc, 0.0)
            o_ref[...] = acc.astype(o_ref.dtype)

    in_specs = [
        pl.BlockSpec((tm, tk), lambda i, j, k: (i, k)),   # patches
        pl.BlockSpec((tk, tn), lambda i, j, k: (k, j)),   # weights (BN-scaled)
        pl.BlockSpec((1, tn), lambda i, j, k: (0, j)),    # bias
    ]
    inputs = [patches, w2d, bias2d]
    if has_res:
        in_specs.append(pl.BlockSpec((tm, tn), lambda i, j, k: (i, j)))
        inputs.append(residual)

    grid_spec = pltpu.PrefetchScalarGridSpec(
        num_scalar_prefetch=0,
        grid=(M // tm, N // tn, nk),
        in_specs=in_specs,
        out_specs=pl.BlockSpec((tm, tn), lambda i, j, k: (i, j)),
        scratch_shapes=[pltpu.VMEM((tm, tn), jnp.float32)],
    )
    return pl.pallas_call(
        kernel,
        out_shape=jax.ShapeDtypeStruct((M, N), out_dtype),
        grid_spec=grid_spec,
        compiler_params=pltpu.CompilerParams(
            dimension_semantics=("parallel", "parallel", "arbitrary"),
            vmem_limit_bytes=32 * 1024 * 1024,   # explicit; safe on v5e/v6e/v7x
        ),
    )(*inputs)


# ---------------------------------------------------------------------------
# Conv + BN (+ residual) (+ ReLU) via im2col + fused Pallas matmul
# ---------------------------------------------------------------------------
def _im2col(x, kh, kw, stride, padding, dilation):
    B, H, W, C = x.shape
    Ho = (H + 2 * padding - dilation * (kh - 1) - 1) // stride + 1
    Wo = (W + 2 * padding - dilation * (kw - 1) - 1) // stride + 1
    xp = jnp.pad(x, ((0, 0), (padding, padding), (padding, padding), (0, 0)))
    cols = []
    for ki in range(kh):
        for kj in range(kw):
            h0, w0 = ki * dilation, kj * dilation
            cols.append(xp[:, h0:h0 + stride * (Ho - 1) + 1:stride,
                              w0:w0 + stride * (Wo - 1) + 1:stride, :])
    patches = jnp.concatenate(cols, axis=-1)            # (B, Ho, Wo, kh*kw*C)
    return patches.reshape(B * Ho * Wo, kh * kw * C), (B, Ho, Wo)


def conv_bn_act(x, conv, *, stride, padding, dilation, relu,
                residual=None, out_dtype=jnp.float32):
    """x: NHWC.  conv: prepared dict (padded bf16 weights, f32 bias).  -> NHWC."""
    kh, kw, cout = conv["kh"], conv["kw"], conv["cout"]
    # TODO(synk): fold the kh*kw tap loop into the kernel itself (shifted-window
    # DMAs accumulated into the same f32 scratch) so the 9x-expanded im2col
    # tensor never hits HBM; kept as a host-side bf16 im2col here because the
    # shifted/strided windows aren't expressible with plain rectangular BlockSpecs.
    patches, (B, Ho, Wo) = _im2col(x.astype(jnp.bfloat16),
                                   kh, kw, stride, padding, dilation)
    M, Kr = patches.shape
    Kp, Np = conv["w2d"].shape

    # Tile sizing: tn matches the 256-wide MXU when possible, tm large first,
    # tk = full K when the double-buffered working set fits the VMEM budget.
    tn = 256 if Np % 256 == 0 else 128
    tm = _pick_tm(M, Np // tn)
    Mp = _round_up(M, tm)
    out_bytes = jnp.dtype(out_dtype).itemsize
    res_bytes = 2 if residual is not None else 0
    tk = _pick_tk(Kp, tm, tn, res_bytes, out_bytes)

    patches_p = jnp.pad(patches, ((0, Mp - M), (0, Kp - Kr)))       # bf16

    res_p = None
    if residual is not None:                                        # bf16 stream
        res2d = residual.reshape(M, cout).astype(jnp.bfloat16)
        res_p = jnp.pad(res2d, ((0, Mp - M), (0, Np - cout)))

    out = _fused_matmul_bias_act(patches_p, conv["w2d"], conv["bias"], res_p,
                                 relu=relu, out_dtype=out_dtype,
                                 tm=tm, tn=tn, tk=tk)
    return out[:M, :cout].reshape(B, Ho, Wo, cout)


# ---------------------------------------------------------------------------
# BasicBlock params: init (PyTorch-like) + one-time kernel-ready preparation
# ---------------------------------------------------------------------------
def _init_conv(key, cout, cin, k):
    fan_in = cin * k * k
    return jax.random.normal(key, (cout, cin, k, k), jnp.float32) / math.sqrt(fan_in)


def _init_bn(key, c):
    k1, k2, k3, k4 = jax.random.split(key, 4)
    gamma = 1.0 + 0.1 * jax.random.normal(k1, (c,), jnp.float32)
    beta = 0.1 * jax.random.normal(k2, (c,), jnp.float32)
    mean = 0.1 * jax.random.normal(k3, (c,), jnp.float32)
    var = jax.random.uniform(k4, (c,), jnp.float32, minval=0.5, maxval=1.5)
    scale = gamma / jnp.sqrt(var + BN_EPS)
    bias = beta - mean * scale
    return scale, bias


def init_basic_block(key, inplanes, planes, stride=1, dilation=1, downsample=False):
    k1, k2, k3, k4, k5, k6 = jax.random.split(key, 6)
    p = {
        "stride": stride, "dilation": dilation,
        "w1": _init_conv(k1, planes, inplanes, 3),
        "w2": _init_conv(k3, planes, planes, 3),
    }
    p["scale1"], p["bias1"] = _init_bn(k2, planes)
    p["scale2"], p["bias2"] = _init_bn(k4, planes)
    if downsample:
        p["wd"] = _init_conv(k5, planes, inplanes, 1)
        p["scaled"], p["biasd"] = _init_bn(k6, planes)
    return p


def _prepare_conv(w, scale, bias):
    """Fold BN scale into weight columns, transpose to (K, Cout), pad to
    lane-dense multiples of 128 and cast to bf16 — done once, not per call."""
    cout, cin, kh, kw = w.shape
    Kr = kh * kw * cin
    Kp = _round_up(Kr, 128)
    Np = _round_up(cout, 128)
    w2d = jnp.transpose(w, (2, 3, 1, 0)).reshape(Kr, cout) * scale[None, :]
    w2d_p = jnp.pad(w2d, ((0, Kp - Kr), (0, Np - cout))).astype(jnp.bfloat16)
    bias_p = jnp.pad(bias, (0, Np - cout)).reshape(1, Np).astype(jnp.float32)
    return {"w2d": w2d_p, "bias": bias_p, "kh": kh, "kw": kw,
            "cin": cin, "cout": cout}


def prepare_basic_block(params):
    prep = {
        "stride": params["stride"], "dilation": params["dilation"],
        "conv1": _prepare_conv(params["w1"], params["scale1"], params["bias1"]),
        "conv2": _prepare_conv(params["w2"], params["scale2"], params["bias2"]),
    }
    if "wd" in params:
        prep["convd"] = _prepare_conv(params["wd"], params["scaled"], params["biasd"])
    return prep


# ---------------------------------------------------------------------------
# BasicBlock forward (Pallas)
# ---------------------------------------------------------------------------
def basic_block_forward(prep, x_nchw):
    """Pallas forward for the PyTorch BasicBlock.  x: NCHW -> out: NCHW."""
    x = jnp.transpose(x_nchw, (0, 2, 3, 1)).astype(jnp.float32)    # NHWC
    stride, dil = prep["stride"], prep["dilation"]

    if "convd" in prep:     # downsample = conv1x1(stride) + BN (no ReLU), bf16 stream
        residual = conv_bn_act(x, prep["convd"], stride=stride, padding=0,
                               dilation=1, relu=False, out_dtype=jnp.bfloat16)
    else:
        residual = x.astype(jnp.bfloat16)

    # conv1 + bn1 + relu  (intermediate kept bf16: it feeds the next bf16 matmul)
    out = conv_bn_act(x, prep["conv1"], stride=stride, padding=dil, dilation=dil,
                      relu=True, out_dtype=jnp.bfloat16)
    # conv2 + bn2 + residual-add + relu fused in one kernel epilogue.
    # TODO(synk): keeping conv1's activation fully resident in VMEM (one
    # pallas_call for the whole block) is a larger restructure; here the
    # intermediate makes one bf16 HBM round-trip inside the same jit.
    out = conv_bn_act(out, prep["conv2"], stride=1, padding=1, dilation=1,
                      relu=True, residual=residual, out_dtype=jnp.float32)
    return jnp.transpose(out, (0, 3, 1, 2))


# ---------------------------------------------------------------------------
# Pure-JAX reference (for correctness check)
# ---------------------------------------------------------------------------
def _ref_conv_bn(x_nhwc, w, scale, bias, stride, padding, dilation):
    out = jax.lax.conv_general_dilated(
        x_nhwc, jnp.transpose(w, (2, 3, 1, 0)),
        window_strides=(stride, stride),
        padding=[(padding, padding), (padding, padding)],
        rhs_dilation=(dilation, dilation),
        dimension_numbers=("NHWC", "HWIO", "NHWC"))
    return out * scale[None, None, None, :] + bias[None, None, None, :]


def basic_block_reference(params, x_nchw):
    x = jnp.transpose(x_nchw, (0, 2, 3, 1)).astype(jnp.float32)
    stride, dil = params["stride"], params["dilation"]
    if "wd" in params:
        residual = _ref_conv_bn(x, params["wd"], params["scaled"], params["biasd"],
                                stride, 0, 1)
    else:
        residual = x
    out = jnp.maximum(_ref_conv_bn(x, params["w1"], params["scale1"], params["bias1"],
                                   stride, dil, dil), 0.0)
    out = _ref_conv_bn(out, params["w2"], params["scale2"], params["bias2"], 1, 1, 1)
    out = jnp.maximum(out + residual, 0.0)
    return jnp.transpose(out, (0, 3, 1, 2))


# ---------------------------------------------------------------------------
if __name__ == "__main__":
    key = jax.random.PRNGKey(0)
    kp1, kp2, kp3, kx1, kx2, kx3 = jax.random.split(key, 6)

    # Case 1: identity residual (inplanes == planes, stride 1, dilation 1).
    p1 = init_basic_block(kp1, inplanes=4, planes=4, stride=1, dilation=1,
                          downsample=False)
    x1 = jax.random.normal(kx1, (2, 4, 16, 16), jnp.float32)

    # Case 2: projection shortcut (stride 2, channel change, 1x1 downsample).
    p2 = init_basic_block(kp2, inplanes=4, planes=8, stride=2, dilation=1,
                          downsample=True)
    x2 = jax.random.normal(kx2, (2, 4, 16, 16), jnp.float32)

    # Case 3: dilated block (dilation 2).
    p3 = init_basic_block(kp3, inplanes=8, planes=8, stride=1, dilation=2,
                          downsample=False)
    x3 = jax.random.normal(kx3, (2, 8, 16, 16), jnp.float32)

    cases = (
        ("identity", p1, x1, (2, 4, 16, 16)),
        ("downsample", p2, x2, (2, 8, 8, 8)),
        ("dilated", p3, x3, (2, 8, 16, 16)),
    )

    for name, p, x, expect_shape in cases:
        prep = jax.tree_util.tree_map(lambda a: a, prepare_basic_block(p))  # built once, outside jit
        fwd = jax.jit(functools.partial(basic_block_forward, prep))
        out = fwd(x)
        jax.block_until_ready(out)

        assert out.shape == expect_shape, (name, out.shape, expect_shape)
        assert bool(jnp.isfinite(out).all()), name

        ref = basic_block_reference(p, x)
        err = float(jnp.max(jnp.abs(out.astype(jnp.float32) - ref)))
        tol = 0.05 * float(jnp.max(jnp.abs(ref))) + 0.05   # bf16-matmul tolerance
        assert err < tol, (name, err, tol)

    print("KERNEL_OK")
</pallas_src>

<mosaic_0001>
module attributes {stable_mosaic.version = 11 : i64} {
  func.func @kernel(%arg0: i32, %arg1: i32, %arg2: i32, %arg3: memref<256x128xbf16, #tpu.memory_space<vmem>>, %arg4: memref<128x128xbf16, #tpu.memory_space<vmem>>, %arg5: memref<1x128xf32, #tpu.memory_space<vmem>>, %arg6: memref<256x128xbf16, #tpu.memory_space<vmem>>, %arg7: memref<256x128xf32, #tpu.memory_space<vmem>>) attributes {dimension_semantics = [#tpu.dimension_semantics<parallel>, #tpu.dimension_semantics<parallel>, #tpu.dimension_semantics<arbitrary>], iteration_bounds = array<i64: 2, 1, 1>, scalar_prefetch = 0 : i64, scratch_operands = 1 : i64, tpu.core_type = #tpu.core_type<tc>, window_params = [{transform_indices = @transform_0, window_bounds = array<i64: 256, 128>}, {transform_indices = @transform_1, window_bounds = array<i64: 128, 128>}, {transform_indices = @transform_2, window_bounds = array<i64: 1, 128>}, {transform_indices = @transform_3, window_bounds = array<i64: 256, 128>}]} {
    %c0_i32 = arith.constant 0 : i32
    %0 = arith.cmpi eq, %arg2, %c0_i32 : i32
    %1 = arith.extui %0 : i1 to i32
    %c0_i32_0 = arith.constant 0 : i32
    %2 = arith.cmpi ne, %1, %c0_i32_0 : i32
    scf.if %2 {
      %c0_10 = arith.constant 0 : index
      %c0_11 = arith.constant 0 : index
      %12 = vector.load %arg5[%c0_10, %c0_11] : memref<1x128xf32, #tpu.memory_space<vmem>>, vector<1x128xf32>
      %13 = vector.shape_cast %12 : vector<1x128xf32> to vector<1x128xf32>
      %14 = vector.broadcast %13 : vector<1x128xf32> to vector<256x128xf32>
      %c0_12 = arith.constant 0 : index
      %c0_13 = arith.constant 0 : index
      %15 = vector.load %arg7[%c0_12, %c0_13] : memref<256x128xf32, #tpu.memory_space<vmem>>, vector<256x128xf32>
      tpu.vector_store %arg7[%c0_12, %c0_13], %14 {strides = array<i32>} : memref<256x128xf32, #tpu.memory_space<vmem>>, vector<256x128xf32>,
    } else {
    }
    %c0 = arith.constant 0 : index
    %c0_1 = arith.constant 0 : index
    %3 = vector.load %arg7[%c0, %c0_1] : memref<256x128xf32, #tpu.memory_space<vmem>>, vector<256x128xf32>
    %c0_2 = arith.constant 0 : index
    %c0_3 = arith.constant 0 : index
    %4 = vector.load %arg3[%c0_2, %c0_3] : memref<256x128xbf16, #tpu.memory_space<vmem>>, vector<256x128xbf16>
    %c0_4 = arith.constant 0 : index
    %c0_5 = arith.constant 0 : index
    %5 = vector.load %arg4[%c0_4, %c0_5] : memref<128x128xbf16, #tpu.memory_space<vmem>>, vector<128x128xbf16>
    %cst = arith.constant dense<0.000000e+00> : vector<256x128xf32>
    %6 = tpu.matmul %4, %5, %cst {dimension_numbers = #tpu.dot_dimension_numbers<[1], [0], [0], [1], [0, 0, 1, 1], [], []>} : vector<256x128xbf16>, vector<128x128xbf16>, vector<256x128xf32> -> vector<256x128xf32>
    %7 = arith.addf %3, %6 : vector<256x128xf32>
    %c0_6 = arith.constant 0 : index
    %c0_7 = arith.constant 0 : index
    %8 = vector.load %arg7[%c0_6, %c0_7] : memref<256x128xf32, #tpu.memory_space<vmem>>, vector<256x128xf32>
    tpu.vector_store %arg7[%c0_6, %c0_7], %7 {strides = array<i32>} : memref<256x128xf32, #tpu.memory_space<vmem>>, vector<256x128xf32>,
    %c0_i32_8 = arith.constant 0 : i32
    %9 = arith.cmpi eq, %arg2, %c0_i32_8 : i32
    %10 = arith.extui %9 : i1 to i32
    %c0_i32_9 = arith.constant 0 : i32
    %11 = arith.cmpi ne, %10, %c0_i32_9 : i32
    scf.if %11 {
      %c0_10 = arith.constant 0 : index
      %c0_11 = arith.constant 0 : index
      %12 = vector.load %arg7[%c0_10, %c0_11] : memref<256x128xf32, #tpu.memory_space<vmem>>, vector<256x128xf32>
      %cst_12 = arith.constant 0.000000e+00 : f32
      %13 = vector.broadcast %cst_12 : f32 to vector<256x128xf32>
      %14 = arith.maximumf %12, %13 : vector<256x128xf32>
      %15 = arith.truncf %14 : vector<256x128xf32> to vector<256x128xbf16>
      %c0_13 = arith.constant 0 : index
      %c0_14 = arith.constant 0 : index
      %16 = vector.load %arg6[%c0_13, %c0_14] : memref<256x128xbf16, #tpu.memory_space<vmem>>, vector<256x128xbf16>
      tpu.vector_store %arg6[%c0_13, %c0_14], %15 {strides = array<i32>} : memref<256x128xbf16, #tpu.memory_space<vmem>>, vector<256x128xbf16>,
    } else {
    }
    return
  }
  func.func @transform_0(%arg0: i32, %arg1: i32, %arg2: i32) -> (i32, i32) {
    %c0_i32 = arith.constant 0 : i32
    return %arg0, %arg2 : i32, i32
  }
  func.func @transform_1(%arg0: i32, %arg1: i32, %arg2: i32) -> (i32, i32) {
    %c0_i32 = arith.constant 0 : i32
    return %arg2, %arg1 : i32, i32
  }
  func.func @transform_2(%arg0: i32, %arg1: i32, %arg2: i32) -> (i32, i32) {
    %c0_i32 = arith.constant 0 : i32
    %c0_i32_0 = arith.constant 0 : i32
    return %c0_i32, %arg1 : i32, i32
  }
  func.func @transform_3(%arg0: i32, %arg1: i32, %arg2: i32) -> (i32, i32) {
    %c0_i32 = arith.constant 0 : i32
    return %arg0, %arg1 : i32, i32
  }
}

module attributes {stable_mosaic.version = 11 : i64} {
  func.func @kernel(%arg0: i32, %arg1: i32, %arg2: i32, %arg3: memref<256x128xbf16, #tpu.memory_space<vmem>>, %arg4: memref<128x128xbf16, #tpu.memory_space<vmem>>, %arg5: memref<1x128xf32, #tpu.memory_space<vmem>>, %arg6: memref<256x128xbf16, #tpu.memory_space<vmem>>, %arg7: memref<256x128xf32, #tpu.memory_space<vmem>>, %arg8: memref<256x128xf32, #tpu.memory_space<vmem>>) attributes {dimension_semantics = [#tpu.dimension_semantics<parallel>, #tpu.dimension_semantics<parallel>, #tpu.dimension_semantics<arbitrary>], iteration_bounds = array<i64: 2, 1, 1>, scalar_prefetch = 0 : i64, scratch_operands = 1 : i64, tpu.core_type = #tpu.core_type<tc>, window_params = [{transform_indices = @transform_0, window_bounds = array<i64: 256, 128>}, {transform_indices = @transform_1, window_bounds = array<i64: 128, 128>}, {transform_indices = @transform_2, window_bounds = array<i64: 1, 128>}, {transform_indices = @transform_3, window_bounds = array<i64: 256, 128>}, {transform_indices = @transform_4, window_bounds = array<i64: 256, 128>}]} {
    %c0_i32 = arith.constant 0 : i32
    %0 = arith.cmpi eq, %arg2, %c0_i32 : i32
    %1 = arith.extui %0 : i1 to i32
    %c0_i32_0 = arith.constant 0 : i32
    %2 = arith.cmpi ne, %1, %c0_i32_0 : i32
    scf.if %2 {
      %c0_10 = arith.constant 0 : index
      %c0_11 = arith.constant 0 : index
      %12 = vector.load %arg5[%c0_10, %c0_11] : memref<1x128xf32, #tpu.memory_space<vmem>>, vector<1x128xf32>
      %13 = vector.shape_cast %12 : vector<1x128xf32> to vector<1x128xf32>
      %14 = vector.broadcast %13 : vector<1x128xf32> to vector<256x128xf32>
      %c0_12 = arith.constant 0 : index
      %c0_13 = arith.constant 0 : index
      %15 = vector.load %arg8[%c0_12, %c0_13] : memref<256x128xf32, #tpu.memory_space<vmem>>, vector<256x128xf32>
      tpu.vector_store %arg8[%c0_12, %c0_13], %14 {strides = array<i32>} : memref<256x128xf32, #tpu.memory_space<vmem>>, vector<256x128xf32>,
    } else {
    }
    %c0 = arith.constant 0 : index
    %c0_1 = arith.constant 0 : index
    %3 = vector.load %arg8[%c0, %c0_1] : memref<256x128xf32, #tpu.memory_space<vmem>>, vector<256x128xf32>
    %c0_2 = arith.constant 0 : index
    %c0_3 = arith.constant 0 : index
    %4 = vector.load %arg3[%c0_2, %c0_3] : memref<256x128xbf16, #tpu.memory_space<vmem>>, vector<256x128xbf16>
    %c0_4 = arith.constant 0 : index
    %c0_5 = arith.constant 0 : index
    %5 = vector.load %arg4[%c0_4, %c0_5] : memref<128x128xbf16, #tpu.memory_space<vmem>>, vector<128x128xbf16>
    %cst = arith.constant dense<0.000000e+00> : vector<256x128xf32>
    %6 = tpu.matmul %4, %5, %cst {dimension_numbers = #tpu.dot_dimension_numbers<[1], [0], [0], [1], [0, 0, 1, 1], [], []>} : vector<256x128xbf16>, vector<128x128xbf16>, vector<256x128xf32> -> vector<256x128xf32>
    %7 = arith.addf %3, %6 : vector<256x128xf32>
    %c0_6 = arith.constant 0 : index
    %c0_7 = arith.constant 0 : index
    %8 = vector.load %arg8[%c0_6, %c0_7] : memref<256x128xf32, #tpu.memory_space<vmem>>, vector<256x128xf32>
    tpu.vector_store %arg8[%c0_6, %c0_7], %7 {strides = array<i32>} : memref<256x128xf32, #tpu.memory_space<vmem>>, vector<256x128xf32>,
    %c0_i32_8 = arith.constant 0 : i32
    %9 = arith.cmpi eq, %arg2, %c0_i32_8 : i32
    %10 = arith.extui %9 : i1 to i32
    %c0_i32_9 = arith.constant 0 : i32
    %11 = arith.cmpi ne, %10, %c0_i32_9 : i32
    scf.if %11 {
      %c0_10 = arith.constant 0 : index
      %c0_11 = arith.constant 0 : index
      %12 = vector.load %arg8[%c0_10, %c0_11] : memref<256x128xf32, #tpu.memory_space<vmem>>, vector<256x128xf32>
      %c0_12 = arith.constant 0 : index
      %c0_13 = arith.constant 0 : index
      %13 = vector.load %arg6[%c0_12, %c0_13] : memref<256x128xbf16, #tpu.memory_space<vmem>>, vector<256x128xbf16>
      %14 = arith.extf %13 : vector<256x128xbf16> to vector<256x128xf32>
      %15 = arith.addf %12, %14 : vector<256x128xf32>
      %cst_14 = arith.constant 0.000000e+00 : f32
      %16 = vector.broadcast %cst_14 : f32 to vector<256x128xf32>
      %17 = arith.maximumf %15, %16 : vector<256x128xf32>
      %c0_15 = arith.constant 0 : index
      %c0_16 = arith.constant 0 : index
      %18 = vector.load %arg7[%c0_15, %c0_16] : memref<256x128xf32, #tpu.memory_space<vmem>>, vector<256x128xf32>
      tpu.vector_store %arg7[%c0_15, %c0_16], %17 {strides = array<i32>} : memref<256x128xf32, #tpu.memory_space<vmem>>, vector<256x128xf32>,
    } else {
    }
    return
  }
  func.func @transform_0(%arg0: i32, %arg1: i32, %arg2: i32) -> (i32, i32) {
    %c0_i32 = arith.constant 0 : i32
    return %arg0, %arg2 : i32, i32
  }
  func.func @transform_1(%arg0: i32, %arg1: i32, %arg2: i32) -> (i32, i32) {
    %c0_i32 = arith.constant 0 : i32
    return %arg2, %arg1 : i32, i32
  }
  func.func @transform_2(%arg0: i32, %arg1: i32, %arg2: i32) -> (i32, i32) {
    %c0_i32 = arith.constant 0 : i32
    %c0_i32_0 = arith.constant 0 : i32
    return %c0_i32, %arg1 : i32, i32
  }
  func.func @transform_3(%arg0: i32, %arg1: i32, %arg2: i32) -> (i32, i32) {
    %c0_i32 = arith.constant 0 : i32
    return %arg0, %arg1 : i32, i32
  }
  func.func @transform_4(%arg0: i32, %arg1: i32, %arg2: i32) -> (i32, i32) {
    %c0_i32 = arith.constant 0 : i32
    return %arg0, %arg1 : i32, i32
  }
}

</mosaic_0001>

<llo_original>
// kernel: basic_block_forward.3
$region0: #{basic_block_forward.3}
  #allocation0 [shape = 'u32[]', space=smem, size = 0x4, offset = 0x4, fixed_abs, tag = 'smem constant byte address 0x4 - core index']
  #allocation1 [shape = 'u32[72,128]{1,0:T(1,128)}', space=vmem, size = 0x9000, scoped, tag = 'internal scratch']
  #allocation2 [shape = 'f32[256,128]{1,0:T(8,128)}', space=vmem, size = 0x20000, scoped, tag = 'scratch operand']
  %s0 = inlined_call_operand.vmem [shape: bf16[512,128], index: 0, kind: input, shape index: {}]
  %s1 = inlined_call_operand.vmem [shape: bf16[128,128], index: 1, kind: input, shape index: {}]
  %s2 = inlined_call_operand.vmem [shape: f32[1,128], index: 2, kind: input, shape index: {}]
  %s3 = inlined_call_operand.vmem [shape: bf16[512,128], index: 3, kind: input, shape index: {}]
  %s4 = inlined_call_operand.vmem [shape: f32[512,128], index: 4, kind: output, shape index: {}]
  %s5 = sld [smem:[#allocation0]]
  $region57: #{basic_block_forward.3} parent=0
    _
  %s7 = ssub.s32 1, %s5
  %s8 = scalar_select 0, %s7, %s5
  loop: start=0, step=1, limit=4
  $region2: #{basic_block_forward.3} parent=0 // loop_pre_header
    _
  $region3: #{basic_block_forward.3} parent=0 // loop_header
    %s10 = sphi 0, %s14
    %p11 = scmp.ge.s32.totalorder %s10, 4
    %s17 = sphi 0, %s36
    %s18 = sphi 0, %s32
    %s19 = sphi 0, %s28
    %s20 = sphi 0, %s17
    %s21 = sphi 0, %s18
    %s22 = sphi 0, %s19
    %s23 = sphi 0, %s20
    %s24 = sphi 0, %s21
    %s25 = sphi 0, %s22
    %s41 = sphi 0, %s43
    %s44 = sphi 0, %s41
    %s45 = sphi 0, %s44
    %s61 = sphi 0, %s45
    %s69 = sphi 0, %s71
    %s72 = sphi 0, %s69
    %s73 = sphi 0, %s72
    %s89 = sphi 0, %s73
    %s95 = sphi 0, %s97
    %s98 = sphi 0, %s95
    %s99 = sphi 0, %s98
    %s115 = sphi 0, %s99
    %s123 = sphi 0, %s125
    %s126 = sphi 0, %s123
    %s127 = sphi 0, %s126
    %s143 = sphi 0, %s127
    %s151 = sphi 0, %s153
    %s154 = sphi 0, %s151
    %s155 = sphi 0, %s154
    %s171 = sphi 0, %s155
  $region4: #{basic_block_forward.3} parent=0 // loop_header_branch
    %13 = sbr.rel (%p11) target = $region8
  $region5: #{basic_block_forward.3} parent=0 // loop_body
    %s15 = ssub.s32 %s10, 1
    %s16 = ssub.s32 %s10, 2
    %s26 = sadd.s32 1, %s19
    %p27 = scmp.ge.s32.totalorder %s26, 1
    %s28 = scalar_select %p27, 0, %s26
    %s29 = sadd.s32 1, %s18
    %s30 = scalar_select %p27, %s29, %s18
    %p31 = scmp.ge.s32.totalorder %s30, 1
    %s32 = scalar_select %p31, 0, %s30
    %s33 = sadd.s32 1, %s17
    %s34 = scalar_select %p31, %s33, %s17
    %p35 = scmp.ge.s32.totalorder %s34, 2
    %s36 = scalar_select %p35, 0, %s34
    %s37 = ssub.s32 %s17, %s36
    %s38 = ssub.s32 %s19, %s28
    %s39 = sor.u32 %s37, %s38
    %p40 = scmp.eq.s32.totalorder %s39, 0
    %s42 = sadd.s32 %s41, 1
    %s43 = scalar_select %p40, %s41, %s42
    %p46 = pneg %p40
    %p47 = scmp.eq.s32.totalorder %s10, 1
    %p48 = por %p46, %p47
    %p49 = scmp.ne.s32.totalorder %s41, %s44
    %p50 = scmp.eq.s32.totalorder %s10, 0
    %p51 = por %p49, %p50
    %p52 = scmp.ne.s32.totalorder %s41, %s44
    %p53 = scmp.eq.s32.totalorder %s15, 1
    %p54 = por %p52, %p53
    %p55 = scmp.ne.s32.totalorder %s44, %s45
    %p56 = scmp.eq.s32.totalorder %s15, 0
    %p57 = por %p55, %p56
    %p58 = scmp.ne.s32.totalorder %s44, %s45
    %p59 = scmp.eq.s32.totalorder %s16, 1
    %p60 = por %p58, %p59
    %p62 = scmp.ne.s32.totalorder %s45, %s61
    %p63 = scmp.eq.s32.totalorder %s16, 0
    %p64 = por %p62, %p63
    %s65 = ssub.s32 %s19, %s28
    %s66 = ssub.s32 %s18, %s32
    %s67 = sor.u32 %s65, %s66
    %p68 = scmp.eq.s32.totalorder %s67, 0
    %s70 = sadd.s32 %s69, 1
    %s71 = scalar_select %p68, %s69, %s70
    %p74 = pneg %p68
    %p75 = scmp.eq.s32.totalorder %s10, 1
    %p76 = por %p74, %p75
    %p77 = scmp.ne.s32.totalorder %s69, %s72
    %p78 = scmp.eq.s32.totalorder %s10, 0
    %p79 = por %p77, %p78
    %p80 = scmp.ne.s32.totalorder %s69, %s72
    %p81 = scmp.eq.s32.totalorder %s15, 1
    %p82 = por %p80, %p81
    %p83 = scmp.ne.s32.totalorder %s72, %s73
    %p84 = scmp.eq.s32.totalorder %s15, 0
    %p85 = por %p83, %p84
    %p86 = scmp.ne.s32.totalorder %s72, %s73
    %p87 = scmp.eq.s32.totalorder %s16, 1
    %p88 = por %p86, %p87
    %p90 = scmp.ne.s32.totalorder %s73, %s89
    %p91 = scmp.eq.s32.totalorder %s16, 0
    %p92 = por %p90, %p91
    %s93 = ssub.s32 %s18, %s32
    %p94 = scmp.eq.s32.totalorder %s93, 0
    %s96 = sadd.s32 %s95, 1
    %s97 = scalar_select %p94, %s95, %s96
    %p100 = pneg %p94
    %p101 = scmp.eq.s32.totalorder %s10, 1
    %p102 = por %p100, %p101
    %p103 = scmp.ne.s32.totalorder %s95, %s98
    %p104 = scmp.eq.s32.totalorder %s10, 0
    %p105 = por %p103, %p104
    %p106 = scmp.ne.s32.totalorder %s95, %s98
    %p107 = scmp.eq.s32.totalorder %s15, 1
    %p108 = por %p106, %p107
    %p109 = scmp.ne.s32.totalorder %s98, %s99
    %p110 = scmp.eq.s32.totalorder %s15, 0
    %p111 = por %p109, %p110
    %p112 = scmp.ne.s32.totalorder %s98, %s99
    %p113 = scmp.eq.s32.totalorder %s16, 1
    %p114 = por %p112, %p113
    %p116 = scmp.ne.s32.totalorder %s99, %s115
    %p117 = scmp.eq.s32.totalorder %s16, 0
    %p118 = por %p116, %p117
    %s119 = ssub.s32 %s17, %s36
    %s120 = ssub.s32 %s18, %s32
    %s121 = sor.u32 %s119, %s120
    %p122 = scmp.eq.s32.totalorder %s121, 0
    %s124 = sadd.s32 %s123, 1
    %s125 = scalar_select %p122, %s123, %s124
    %p128 = pneg %p122
    %p129 = scmp.eq.s32.totalorder %s10, 1
    %p130 = por %p128, %p129
    %p131 = scmp.ne.s32.totalorder %s123, %s126
    %p132 = scmp.eq.s32.totalorder %s10, 0
    %p133 = por %p131, %p132
    %p134 = scmp.ne.s32.totalorder %s123, %s126
    %p135 = scmp.eq.s32.totalorder %s15, 1
    %p136 = por %p134, %p135
    %p137 = scmp.ne.s32.totalorder %s126, %s127
    %p138 = scmp.eq.s32.totalorder %s15, 0
    %p139 = por %p137, %p138
    %p140 = scmp.ne.s32.totalorder %s126, %s127
    %p141 = scmp.eq.s32.totalorder %s16, 1
    %p142 = por %p140, %p141
    %p144 = scmp.ne.s32.totalorder %s127, %s143
    %p145 = scmp.eq.s32.totalorder %s16, 0
    %p146 = por %p144, %p145
    %s147 = ssub.s32 %s17, %s36
    %s148 = ssub.s32 %s18, %s32
    %s149 = sor.u32 %s147, %s148
    %p150 = scmp.eq.s32.totalorder %s149, 0
    %s152 = sadd.s32 %s151, 1
    %s153 = scalar_select %p150, %s151, %s152
    %p156 = pneg %p150
    %p157 = scmp.eq.s32.totalorder %s10, 1
    %p158 = por %p156, %p157
    %p159 = scmp.ne.s32.totalorder %s151, %s154
    %p160 = scmp.eq.s32.totalorder %s10, 0
    %p161 = por %p159, %p160
    %p162 = scmp.ne.s32.totalorder %s151, %s154
    %p163 = scmp.eq.s32.totalorder %s15, 1
    %p164 = por %p162, %p163
    %p165 = scmp.ne.s32.totalorder %s154, %s155
    %p166 = scmp.eq.s32.totalorder %s15, 0
    %p167 = por %p165, %p166
    %p168 = scmp.ne.s32.totalorder %s154, %s155
    %p169 = scmp.eq.s32.totalorder %s16, 1
    %p170 = por %p168, %p169
    %p172 = scmp.ne.s32.totalorder %s155, %s171
    %p173 = scmp.eq.s32.totalorder %s16, 0
    %p174 = por %p172, %p173
    %p175 = scmp.le.s32.totalorder 1, %s10
    %p176 = scmp.lt.s32.totalorder %s10, 3
    %p177 = pnand %p175, %p176
    %p178 = pneg %p177
    // Predicated region
    $region9: #{basic_block_forward.3} parent=5 // pred_check
      _
    $region10: #{basic_block_forward.3} parent=5 // pred_check_branch
      %180 = sbr.rel (%p177) target = $region12
    $region11: #{basic_block_forward.3} parent=5 // pred_region
      %s181 = ssub.s32 %s10, 1
      // Predicated region
      $region13: #{basic_block_forward.3} parent=11 // pred_check
        %p182 = pneg %p85
      $region14: #{basic_block_forward.3} parent=11 // pred_check_branch
        %184 = sbr.rel (%p182) target = $region16
      $region15: #{basic_block_forward.3} parent=11 // pred_region
        %s185 = smul.u32 16, %s22
        %p186 = scmp.lt.s32.totalorder %s185, 15
        %s187 = scalar_select %p186, %s185, 15
        %p188 = scmp.lt.s32.totalorder %s21, 0
        %s189 = scalar_select %p188, %s21, 0
        %s190 = sadd.s32 %s189, %s187
        %s191 = smul.addr %s190, 4
        %s192 = scalar_lea.vmem %s1, %s191
        %s193 = smul.u32 16, %s22
      $region16: #{basic_block_forward.3} parent=11 // pred_fallthru
        _
      // Predicated region
      $region17: #{basic_block_forward.3} parent=11 // pred_check
        %p194 = pneg %p111
      $region18: #{basic_block_forward.3} parent=11 // pred_check_branch
        %196 = sbr.rel (%p194) target = $region20
      $region19: #{basic_block_forward.3} parent=11 // pred_region
        %p197 = scmp.lt.s32.totalorder %s21, 0
        %s198 = scalar_select %p197, %s21, 0
        %s199 = scalar_lea.vmem %s2, %s198
      $region20: #{basic_block_forward.3} parent=11 // pred_fallthru
        _
    $region12: #{basic_block_forward.3} parent=5 // pred_fallthru
      _
    %p200 = scmp.lt.s32.totalorder %s10, 2
    // Predicated region
    $region21: #{basic_block_forward.3} parent=5 // pred_check
      %p201 = pneg %p200
    $region22: #{basic_block_forward.3} parent=5 // pred_check_branch
      %203 = sbr.rel (%p201) target = $region24
    $region23: #{basic_block_forward.3} parent=5 // pred_region
      // Predicated region
      $region25: #{basic_block_forward.3} parent=23 // pred_check
        %p204 = pneg %p51
      $region26: #{basic_block_forward.3} parent=23 // pred_check_branch
        %206 = sbr.rel (%p204) target = $region28
      $region27: #{basic_block_forward.3} parent=23 // pred_region
        %s207 = smul.u32 32, %s17
        %p208 = scmp.lt.s32.totalorder %s207, 63
        %s209 = scalar_select %p208, %s207, 63
        %p210 = scmp.lt.s32.totalorder %s19, 0
        %s211 = scalar_select %p210, %s19, 0
        %s212 = sadd.s32 %s211, %s209
        %s213 = smul.addr %s212, 4
        %s214 = scalar_lea.vmem %s0, %s213
        %s215 = smul.u32 32, %s17
      $region28: #{basic_block_forward.3} parent=23 // pred_fallthru
        _
      // Predicated region
      $region29: #{basic_block_forward.3} parent=23 // pred_check
        %p216 = pneg %p133
      $region30: #{basic_block_forward.3} parent=23 // pred_check_branch
        %218 = sbr.rel (%p216) target = $region32
      $region31: #{basic_block_forward.3} parent=23 // pred_region
        %s219 = smul.u32 32, %s17
        %p220 = scmp.lt.s32.totalorder %s219, 63
        %s221 = scalar_select %p220, %s219, 63
        %p222 = scmp.lt.s32.totalorder %s18, 0
        %s223 = scalar_select %p222, %s18, 0
        %s224 = sadd.s32 %s223, %s221
        %s225 = smul.addr %s224, 4
        %s226 = scalar_lea.vmem %s3, %s225
        %s227 = smul.u32 32, %s17
      $region32: #{basic_block_forward.3} parent=23 // pred_fallthru
        _
    $region24: #{basic_block_forward.3} parent=5 // pred_fallthru
      _
    %p228 = scmp.le.s32.totalorder 1, %s10
    %p229 = scmp.lt.s32.totalorder %s10, 3
    %p230 = pnand %p228, %p229
    %p231 = pneg %p230
    // Predicated region
    $region33: #{basic_block_forward.3} parent=5 // pred_check
      _
    $region34: #{basic_block_forward.3} parent=5 // pred_check_branch
      %233 = sbr.rel (%p230) target = $region36
    $region35: #{basic_block_forward.3} parent=5 // pred_region
      %s234 = ssub.s32 %s10, 1
      %s235 = smul.u32 32, %s20
      %p236 = scmp.lt.s32.totalorder %s235, 63
      %s237 = scalar_select %p236, %s235, 63
      %p238 = scmp.lt.s32.totalorder %s22, 0
      %s239 = scalar_select %p238, %s22, 0
      %s240 = sadd.s32 %s239, %s237
      %s241 = smul.addr %s240, 4
      %s242 = scalar_lea.vmem %s0, %s241
      %p243 = pneg %p57
      %p244 = pneg %p54
      %s245 = smul.u32 16, %s22
      %p246 = scmp.lt.s32.totalorder %s245, 15
      %s247 = scalar_select %p246, %s245, 15
      %p248 = scmp.lt.s32.totalorder %s21, 0
      %s249 = scalar_select %p248, %s21, 0
      %s250 = sadd.s32 %s249, %s247
      %s251 = smul.addr %s250, 4
      %s252 = scalar_lea.vmem %s1, %s251
      %p253 = pneg %p85
      %p254 = pneg %p82
      %p255 = scmp.lt.s32.totalorder %s21, 0
      %s256 = scalar_select %p255, %s21, 0
      %s257 = scalar_lea.vmem %s2, %s256
      %p258 = pneg %p111
      %p259 = pneg %p108
      %s260 = smul.u32 32, %s20
      %p261 = scmp.lt.s32.totalorder %s260, 63
      %s262 = scalar_select %p261, %s260, 63
      %p263 = scmp.lt.s32.totalorder %s21, 0
      %s264 = scalar_select %p263, %s21, 0
      %s265 = sadd.s32 %s264, %s262
      %s266 = smul.addr %s265, 4
      %s267 = scalar_lea.vmem %s3, %s266
      %p268 = pneg %p139
      %p269 = pneg %p136
      %p270 = pneg %p167
      %p271 = pneg %p164
      %s272 = smul.u32 32, %s20
      %p273 = scmp.lt.s32.totalorder %s272, 63
      %s274 = scalar_select %p273, %s272, 63
      %p275 = scmp.lt.s32.totalorder %s21, 0
      %s276 = scalar_select %p275, %s21, 0
      %s277 = sadd.s32 %s276, %s274
      %s278 = smul.addr %s277, 8
      %s279 = scalar_lea.vmem %s4, %s278
      %s280 = smul.u32 32, %s20
      %p281 = scmp.lt.s32.totalorder %s280, 63
      %s282 = scalar_select %p281, %s280, 63
      %p283 = scmp.lt.s32.totalorder %s22, 0
      %s284 = scalar_select %p283, %s22, 0
      %s285 = sadd.s32 %s284, %s282
      %s286 = smul.addr %s285, 4
      %s287 = scalar_lea.vmem %s0, %s286
      %s288 = smul.u32 32, %s20
      %s289 = smul.u32 16, %s22
      %p290 = scmp.lt.s32.totalorder %s289, 15
      %s291 = scalar_select %p290, %s289, 15
      %p292 = scmp.lt.s32.totalorder %s21, 0
      %s293 = scalar_select %p292, %s21, 0
      %s294 = sadd.s32 %s293, %s291
      %s295 = smul.addr %s294, 4
      %s296 = scalar_lea.vmem %s1, %s295
      %s297 = smul.u32 16, %s22
      %p298 = scmp.lt.s32.totalorder %s21, 0
      %s299 = scalar_select %p298, %s21, 0
      %s300 = scalar_lea.vmem %s2, %s299
      %s301 = smul.u32 32, %s20
      %p302 = scmp.lt.s32.totalorder %s301, 63
      %s303 = scalar_select %p302, %s301, 63
      %p304 = scmp.lt.s32.totalorder %s21, 0
      %s305 = scalar_select %p304, %s21, 0
      %s306 = sadd.s32 %s305, %s303
      %s307 = smul.addr %s306, 4
      %s308 = scalar_lea.vmem %s3, %s307
      %s309 = smul.u32 32, %s20
      %s310 = smul.u32 32, %s20
      %p311 = scmp.lt.s32.totalorder %s310, 63
      %s312 = scalar_select %p311, %s310, 63
      %p313 = scmp.lt.s32.totalorder %s21, 0
      %s314 = scalar_select %p313, %s21, 0
      %s315 = sadd.s32 %s314, %s312
      %s316 = smul.addr %s315, 8
      %s317 = scalar_lea.vmem %s4, %s316
      %s318 = smul.u32 32, %s20
      %p319 = scmp.eq.s32.totalorder %s22, 0
      // Predicated region
      $region37: #{basic_block_forward.3} parent=35 // pred_check
        %p320 = pneg %p319
      $region38: #{basic_block_forward.3} parent=35 // pred_check_branch
        %322 = sbr.rel (%p320) target = $region40
      $region39: #{basic_block_forward.3} parent=35 // pred_region
        %v323 = vld [vmem:[%s300] sm:$0x1]
        %v325 = vperm.slane %v323, 0
        %327 = vst [vmem:[#allocation2] sm:$0xff] %v325
        %328 = vst [vmem:[#allocation2 + $0x8] sm:$0xff] %v325
        %329 = vst [vmem:[#allocation2 + $0x10] sm:$0xff] %v325
        %330 = vst [vmem:[#allocation2 + $0x18] sm:$0xff] %v325
        %331 = vst [vmem:[#allocation2 + $0x20] sm:$0xff] %v325
        %332 = vst [vmem:[#allocation2 + $0x28] sm:$0xff] %v325
        %333 = vst [vmem:[#allocation2 + $0x30] sm:$0xff] %v325
        %334 = vst [vmem:[#allocation2 + $0x38] sm:$0xff] %v325
        %335 = vst [vmem:[#allocation2 + $0x40] sm:$0xff] %v325
        %336 = vst [vmem:[#allocation2 + $0x48] sm:$0xff] %v325
        %337 = vst [vmem:[#allocation2 + $0x50] sm:$0xff] %v325
        %338 = vst [vmem:[#allocation2 + $0x58] sm:$0xff] %v325
        %339 = vst [vmem:[#allocation2 + $0x60] sm:$0xff] %v325
        %340 = vst [vmem:[#allocation2 + $0x68] sm:$0xff] %v325
        %341 = vst [vmem:[#allocation2 + $0x70] sm:$0xff] %v325
        %342 = vst [vmem:[#allocation2 + $0x78] sm:$0xff] %v325
        %343 = vst [vmem:[#allocation2 + $0x80] sm:$0xff] %v325
        %344 = vst [vmem:[#allocation2 + $0x88] sm:$0xff] %v325
        %345 = vst [vmem:[#allocation2 + $0x90] sm:$0xff] %v325
        %346 = vst [vmem:[#allocation2 + $0x98] sm:$0xff] %v325
        %347 = vst [vmem:[#allocation2 + $0xa0] sm:$0xff] %v325
        %348 = vst [vmem:[#allocation2 + $0xa8] sm:$0xff] %v325
        %349 = vst [vmem:[#allocation2 + $0xb0] sm:$0xff] %v325
        %350 = vst [vmem:[#allocation2 + $0xb8] sm:$0xff] %v325
        %351 = vst [vmem:[#allocation2 + $0xc0] sm:$0xff] %v325
        %352 = vst [vmem:[#allocation2 + $0xc8] sm:$0xff] %v325
        %353 = vst [vmem:[#allocation2 + $0xd0] sm:$0xff] %v325
        %354 = vst [vmem:[#allocation2 + $0xd8] sm:$0xff] %v325
        %355 = vst [vmem:[#allocation2 + $0xe0] sm:$0xff] %v325
        %356 = vst [vmem:[#allocation2 + $0xe8] sm:$0xff] %v325
        %357 = vst [vmem:[#allocation2 + $0xf0] sm:$0xff] %v325
        %358 = vst [vmem:[#allocation2 + $0xf8] sm:$0xff] %v325
      $region40: #{basic_block_forward.3} parent=35 // pred_fallthru
        _
      %v359 = vld [vmem:[#allocation2] sm:$0xff]
      %v360 = vld [vmem:[#allocation2 + $0x8] sm:$0xff]
      %v361 = vld [vmem:[#allocation2 + $0x10] sm:$0xff]
      %v362 = vld [vmem:[#allocation2 + $0x18] sm:$0xff]
      %v363 = vld [vmem:[#allocation2 + $0x20] sm:$0xff]
      %v364 = vld [vmem:[#allocation2 + $0x28] sm:$0xff]
      %v365 = vld [vmem:[#allocation2 + $0x30] sm:$0xff]
      %v366 = vld [vmem:[#allocation2 + $0x38] sm:$0xff]
      %v367 = vld [vmem:[#allocation2 + $0x40] sm:$0xff]
      %v368 = vld [vmem:[#allocation2 + $0x48] sm:$0xff]
      %v369 = vld [vmem:[#allocation2 + $0x50] sm:$0xff]
      %v370 = vld [vmem:[#allocation2 + $0x58] sm:$0xff]
      %v371 = vld [vmem:[#allocation2 + $0x60] sm:$0xff]
      %v372 = vld [vmem:[#allocation2 + $0x68] sm:$0xff]
      %v373 = vld [vmem:[#allocation2 + $0x70] sm:$0xff]
      %v374 = vld [vmem:[#allocation2 + $0x78] sm:$0xff]
      %v375 = vld [vmem:[#allocation2 + $0x80] sm:$0xff]
      %v376 = vld [vmem:[#allocation2 + $0x88] sm:$0xff]
      %v377 = vld [vmem:[#allocation2 + $0x90] sm:$0xff]
      %v378 = vld [vmem:[#allocation2 + $0x98] sm:$0xff]
      %v379 = vld [vmem:[#allocation2 + $0xa0] sm:$0xff]
      %v380 = vld [vmem:[#allocation2 + $0xa8] sm:$0xff]
      %v381 = vld [vmem:[#allocation2 + $0xb0] sm:$0xff]
      %v382 = vld [vmem:[#allocation2 + $0xb8] sm:$0xff]
      %v383 = vld [vmem:[#allocation2 + $0xc0] sm:$0xff]
      %v384 = vld [vmem:[#allocation2 + $0xc8] sm:$0xff]
      %v385 = vld [vmem:[#allocation2 + $0xd0] sm:$0xff]
      %v386 = vld [vmem:[#allocation2 + $0xd8] sm:$0xff]
      %v387 = vld [vmem:[#allocation2 + $0xe0] sm:$0xff]
      %v388 = vld [vmem:[#allocation2 + $0xe8] sm:$0xff]
      %v389 = vld [vmem:[#allocation2 + $0xf0] sm:$0xff]
      %v390 = vld [vmem:[#allocation2 + $0xf8] sm:$0xff]
      %v391 = vld [vmem:[%s287] sm:$0xf]
      %v392 = vld [vmem:[%s287 + $0x4] sm:$0xf]
      %v393 = vld [vmem:[%s287 + $0x8] sm:$0xf]
      %v394 = vld [vmem:[%s287 + $0xc] sm:$0xf]
      %v395 = vld [vmem:[%s287 + $0x10] sm:$0xf]
      %v396 = vld [vmem:[%s287 + $0x14] sm:$0xf]
      %v397 = vld [vmem:[%s287 + $0x18] sm:$0xf]
      %v398 = vld [vmem:[%s287 + $0x1c] sm:$0xf]
      %v399 = vld [vmem:[%s287 + $0x20] sm:$0xf]
      %v400 = vld [vmem:[%s287 + $0x24] sm:$0xf]
      %v401 = vld [vmem:[%s287 + $0x28] sm:$0xf]
      %v402 = vld [vmem:[%s287 + $0x2c] sm:$0xf]
      %v403 = vld [vmem:[%s287 + $0x30] sm:$0xf]
      %v404 = vld [vmem:[%s287 + $0x34] sm:$0xf]
      %v405 = vld [vmem:[%s287 + $0x38] sm:$0xf]
      %v406 = vld [vmem:[%s287 + $0x3c] sm:$0xf]
      %v407 = vld [vmem:[%s287 + $0x40] sm:$0xf]
      %v408 = vld [vmem:[%s287 + $0x44] sm:$0xf]
      %v409 = vld [vmem:[%s287 + $0x48] sm:$0xf]
      %v410 = vld [vmem:[%s287 + $0x4c] sm:$0xf]
      %v411 = vld [vmem:[%s287 + $0x50] sm:$0xf]
      %v412 = vld [vmem:[%s287 + $0x54] sm:$0xf]
      %v413 = vld [vmem:[%s287 + $0x58] sm:$0xf]
      %v414 = vld [vmem:[%s287 + $0x5c] sm:$0xf]
      %v415 = vld [vmem:[%s287 + $0x60] sm:$0xf]
      %v416 = vld [vmem:[%s287 + $0x64] sm:$0xf]
      %v417 = vld [vmem:[%s287 + $0x68] sm:$0xf]
      %v418 = vld [vmem:[%s287 + $0x6c] sm:$0xf]
      %v419 = vld [vmem:[%s287 + $0x70] sm:$0xf]
      %v420 = vld [vmem:[%s287 + $0x74] sm:$0xf]
      %v421 = vld [vmem:[%s287 + $0x78] sm:$0xf]
      %v422 = vld [vmem:[%s287 + $0x7c] sm:$0xf]
      %v423 = vld [vmem:[%s296] sm:$0xf]
      %v424 = vld [vmem:[%s296 + $0x4] sm:$0xf]
      %v425 = vld [vmem:[%s296 + $0x8] sm:$0xf]
      %v426 = vld [vmem:[%s296 + $0xc] sm:$0xf]
      %v427 = vld [vmem:[%s296 + $0x10] sm:$0xf]
      %v428 = vld [vmem:[%s296 + $0x14] sm:$0xf]
      %v429 = vld [vmem:[%s296 + $0x18] sm:$0xf]
      %v430 = vld [vmem:[%s296 + $0x1c] sm:$0xf]
      %v431 = vld [vmem:[%s296 + $0x20] sm:$0xf]
      %v432 = vld [vmem:[%s296 + $0x24] sm:$0xf]
      %v433 = vld [vmem:[%s296 + $0x28] sm:$0xf]
      %v434 = vld [vmem:[%s296 + $0x2c] sm:$0xf]
      %v435 = vld [vmem:[%s296 + $0x30] sm:$0xf]
      %v436 = vld [vmem:[%s296 + $0x34] sm:$0xf]
      %v437 = vld [vmem:[%s296 + $0x38] sm:$0xf]
      %v438 = vld [vmem:[%s296 + $0x3c] sm:$0xf]
      %v471 = vunpack.c.l.b16 %v391
      %v472 = vunpack.c.l.b16 %v392
      %v473 = vunpack.c.l.b16 %v393
      %v474 = vunpack.c.l.b16 %v394
      %v475 = vunpack.c.l.b16 %v395
      %v476 = vunpack.c.l.b16 %v396
      %v477 = vunpack.c.l.b16 %v397
      %v478 = vunpack.c.l.b16 %v398
      %v479 = vunpack.c.l.b16 %v399
      %v480 = vunpack.c.l.b16 %v400
      %v481 = vunpack.c.l.b16 %v401
      %v482 = vunpack.c.l.b16 %v402
      %v483 = vunpack.c.l.b16 %v403
      %v484 = vunpack.c.l.b16 %v404
      %v485 = vunpack.c.l.b16 %v405
      %v486 = vunpack.c.l.b16 %v406
      %v487 = vunpack.c.l.b16 %v407
      %v488 = vunpack.c.l.b16 %v408
      %v489 = vunpack.c.l.b16 %v409
      %v490 = vunpack.c.l.b16 %v410
      %v491 = vunpack.c.l.b16 %v411
      %v492 = vunpack.c.l.b16 %v412
      %v493 = vunpack.c.l.b16 %v413
      %v494 = vunpack.c.l.b16 %v414
      %v495 = vunpack.c.l.b16 %v415
      %v496 = vunpack.c.l.b16 %v416
      %v497 = vunpack.c.l.b16 %v417
      %v498 = vunpack.c.l.b16 %v418
      %v499 = vunpack.c.l.b16 %v419
      %v500 = vunpack.c.l.b16 %v420
      %v501 = vunpack.c.l.b16 %v421
      %v502 = vunpack.c.l.b16 %v422
      %v503 = vpack.c.b16 %v472, %v471
      %v504 = vpack.c.b16 %v474, %v473
      %v505 = vpack.c.b16 %v476, %v475
      %v506 = vpack.c.b16 %v478, %v477
      %v507 = vpack.c.b16 %v480, %v479
      %v508 = vpack.c.b16 %v482, %v481
      %v509 = vpack.c.b16 %v484, %v483
      %v510 = vpack.c.b16 %v486, %v485
      %v511 = vpack.c.b16 %v488, %v487
      %v512 = vpack.c.b16 %v490, %v489
      %v513 = vpack.c.b16 %v492, %v491
      %v514 = vpack.c.b16 %v494, %v493
      %v515 = vpack.c.b16 %v496, %v495
      %v516 = vpack.c.b16 %v498, %v497
      %v517 = vpack.c.b16 %v500, %v499
      %v518 = vpack.c.b16 %v502, %v501
      %v551 = vunpack.c.l.b16 %v423
      %v552 = vunpack.c.l.b16 %v424
      %v553 = vunpack.c.l.b16 %v425
      %v554 = vunpack.c.l.b16 %v426
      %v555 = vunpack.c.l.b16 %v427
      %v556 = vunpack.c.l.b16 %v428
      %v557 = vunpack.c.l.b16 %v429
      %v558 = vunpack.c.l.b16 %v430
      %v559 = vunpack.c.l.b16 %v431
      %v560 = vunpack.c.l.b16 %v432
      %v561 = vunpack.c.l.b16 %v433
      %v562 = vunpack.c.l.b16 %v434
      %v563 = vunpack.c.l.b16 %v435
      %v564 = vunpack.c.l.b16 %v436
      %v565 = vunpack.c.l.b16 %v437
      %v566 = vunpack.c.l.b16 %v438
      %v567 = vpack.c.b16 %v552, %v551
      %v568 = vpack.c.b16 %v554, %v553
      %v569 = vpack.c.b16 %v556, %v555
      %v570 = vpack.c.b16 %v558, %v557
      %v571 = vpack.c.b16 %v560, %v559
      %v572 = vpack.c.b16 %v562, %v561
      %v573 = vpack.c.b16 %v564, %v563
      %v574 = vpack.c.b16 %v566, %v565
      %583 = vmatpush.bf16.msra.mxu0 %v574
      %584 = vmatpush.bf16.msra.mxu0 %v573
      %585 = vmatpush.bf16.msra.mxu0 %v572
      %586 = vmatpush.bf16.msra.mxu0 %v571
      %587 = vmatpush.bf16.msra.mxu0 %v570
      %588 = vmatpush.bf16.msra.mxu0 %v569
      %589 = vmatpush.bf16.msra.mxu0 %v568
      %590 = vmatpush.bf16.msra.mxu0 %v567
      %591 = vmatmul.bf16.gmra.mxu0 %v503
      %v592 = vpop.f32.mrf.mxu0
      %v593 = vadd.f32 0.0, %v592
      %v594 = vpop.f32.mrf.mxu0
      %v595 = vadd.f32 0.0, %v594
      %596 = vmatmul.bf16.gmra.mxu0 %v504
      %v597 = vpop.f32.mrf.mxu0
      %v598 = vadd.f32 0.0, %v597
      %v599 = vpop.f32.mrf.mxu0
      %v600 = vadd.f32 0.0, %v599
      %601 = vmatmul.bf16.gmra.mxu0 %v505
      %v602 = vpop.f32.mrf.mxu0
      %v603 = vadd.f32 0.0, %v602
      %v604 = vpop.f32.mrf.mxu0
      %v605 = vadd.f32 0.0, %v604
      %606 = vmatmul.bf16.gmra.mxu0 %v506
      %v607 = vpop.f32.mrf.mxu0
      %v608 = vadd.f32 0.0, %v607
      %v609 = vpop.f32.mrf.mxu0
      %v610 = vadd.f32 0.0, %v609
      %611 = vmatmul.bf16.gmra.mxu0 %v507
      %v612 = vpop.f32.mrf.mxu0
      %v613 = vadd.f32 0.0, %v612
      %v614 = vpop.f32.mrf.mxu0
      %v615 = vadd.f32 0.0, %v614
      %616 = vmatmul.bf16.gmra.mxu0 %v508
      %v617 = vpop.f32.mrf.mxu0
      %v618 = vadd.f32 0.0, %v617
      %v619 = vpop.f32.mrf.mxu0
      %v620 = vadd.f32 0.0, %v619
      %621 = vmatmul.bf16.gmra.mxu0 %v509
      %v622 = vpop.f32.mrf.mxu0
      %v623 = vadd.f32 0.0, %v622
      %v624 = vpop.f32.mrf.mxu0
      %v625 = vadd.f32 0.0, %v624
      %626 = vmatmul.bf16.gmra.mxu0 %v510
      %v627 = vpop.f32.mrf.mxu0
      %v628 = vadd.f32 0.0, %v627
      %v629 = vpop.f32.mrf.mxu0
      %v630 = vadd.f32 0.0, %v629
      %631 = vmatmul.bf16.gmra.mxu0 %v511
      %v632 = vpop.f32.mrf.mxu0
      %v633 = vadd.f32 0.0, %v632
      %v634 = vpop.f32.mrf.mxu0
      %v635 = vadd.f32 0.0, %v634
      %636 = vmatmul.bf16.gmra.mxu0 %v512
      %v637 = vpop.f32.mrf.mxu0
      %v638 = vadd.f32 0.0, %v637
      %v639 = vpop.f32.mrf.mxu0
      %v640 = vadd.f32 0.0, %v639
      %641 = vmatmul.bf16.gmra.mxu0 %v513
      %v642 = vpop.f32.mrf.mxu0
      %v643 = vadd.f32 0.0, %v642
      %v644 = vpop.f32.mrf.mxu0
      %v645 = vadd.f32 0.0, %v644
      %646 = vmatmul.bf16.gmra.mxu0 %v514
      %v647 = vpop.f32.mrf.mxu0
      %v648 = vadd.f32 0.0, %v647
      %v649 = vpop.f32.mrf.mxu0
      %v650 = vadd.f32 0.0, %v649
      %651 = vmatmul.bf16.gmra.mxu0 %v515
      %v652 = vpop.f32.mrf.mxu0
      %v653 = vadd.f32 0.0, %v652
      %v654 = vpop.f32.mrf.mxu0
      %v655 = vadd.f32 0.0, %v654
      %656 = vmatmul.bf16.gmra.mxu0 %v516
      %v657 = vpop.f32.mrf.mxu0
      %v658 = vadd.f32 0.0, %v657
      %v659 = vpop.f32.mrf.mxu0
      %v660 = vadd.f32 0.0, %v659
      %661 = vmatmul.bf16.gmra.mxu0 %v517
      %v662 = vpop.f32.mrf.mxu0
      %v663 = vadd.f32 0.0, %v662
      %v664 = vpop.f32.mrf.mxu0
      %v665 = vadd.f32 0.0, %v664
      %666 = vmatmul.bf16.gmra.mxu0 %v518
      %v667 = vpop.f32.mrf.mxu0
      %v668 = vadd.f32 0.0, %v667
      %v669 = vpop.f32.mrf.mxu0
      %v670 = vadd.f32 0.0, %v669
      %671 = vdwg.mxu0
      %v672 = vadd.f32 %v359, %v593
      %v673 = vadd.f32 %v360, %v595
      %v674 = vadd.f32 %v361, %v598
      %v675 = vadd.f32 %v362, %v600
      %v676 = vadd.f32 %v363, %v603
      %v677 = vadd.f32 %v364, %v605
      %v678 = vadd.f32 %v365, %v608
      %v679 = vadd.f32 %v366, %v610
      %v680 = vadd.f32 %v367, %v613
      %v681 = vadd.f32 %v368, %v615
      %v682 = vadd.f32 %v369, %v618
      %v683 = vadd.f32 %v370, %v620
      %v684 = vadd.f32 %v371, %v623
      %v685 = vadd.f32 %v372, %v625
      %v686 = vadd.f32 %v373, %v628
      %v687 = vadd.f32 %v374, %v630
      %v688 = vadd.f32 %v375, %v633
      %v689 = vadd.f32 %v376, %v635
      %v690 = vadd.f32 %v377, %v638
      %v691 = vadd.f32 %v378, %v640
      %v692 = vadd.f32 %v379, %v643
      %v693 = vadd.f32 %v380, %v645
      %v694 = vadd.f32 %v381, %v648
      %v695 = vadd.f32 %v382, %v650
      %v696 = vadd.f32 %v383, %v653
      %v697 = vadd.f32 %v384, %v655
      %v698 = vadd.f32 %v385, %v658
      %v699 = vadd.f32 %v386, %v660
      %v700 = vadd.f32 %v387, %v663
      %v701 = vadd.f32 %v388, %v665
      %v702 = vadd.f32 %v389, %v668
      %v703 = vadd.f32 %v390, %v670
      %704 = vst [vmem:[#allocation2] sm:$0xff] %v672
      %705 = vst [vmem:[#allocation2 + $0x8] sm:$0xff] %v673
      %706 = vst [vmem:[#allocation2 + $0x10] sm:$0xff] %v674
      %707 = vst [vmem:[#allocation2 + $0x18] sm:$0xff] %v675
      %708 = vst [vmem:[#allocation2 + $0x20] sm:$0xff] %v676
      %709 = vst [vmem:[#allocation2 + $0x28] sm:$0xff] %v677
      %710 = vst [vmem:[#allocation2 + $0x30] sm:$0xff] %v678
      %711 = vst [vmem:[#allocation2 + $0x38] sm:$0xff] %v679
      %712 = vst [vmem:[#allocation2 + $0x40] sm:$0xff] %v680
      %713 = vst [vmem:[#allocation2 + $0x48] sm:$0xff] %v681
      %714 = vst [vmem:[#allocation2 + $0x50] sm:$0xff] %v682
      %715 = vst [vmem:[#allocation2 + $0x58] sm:$0xff] %v683
      %716 = vst [vmem:[#allocation2 + $0x60] sm:$0xff] %v684
      %717 = vst [vmem:[#allocation2 + $0x68] sm:$0xff] %v685
      %718 = vst [vmem:[#allocation2 + $0x70] sm:$0xff] %v686
      %719 = vst [vmem:[#allocation2 + $0x78] sm:$0xff] %v687
      %720 = vst [vmem:[#allocation2 + $0x80] sm:$0xff] %v688
      %721 = vst [vmem:[#allocation2 + $0x88] sm:$0xff] %v689
      %722 = vst [vmem:[#allocation2 + $0x90] sm:$0xff] %v690
      %723 = vst [vmem:[#allocation2 + $0x98] sm:$0xff] %v691
      %724 = vst [vmem:[#allocation2 + $0xa0] sm:$0xff] %v692
      %725 = vst [vmem:[#allocation2 + $0xa8] sm:$0xff] %v693
      %726 = vst [vmem:[#allocation2 + $0xb0] sm:$0xff] %v694
      %727 = vst [vmem:[#allocation2 + $0xb8] sm:$0xff] %v695
      %728 = vst [vmem:[#allocation2 + $0xc0] sm:$0xff] %v696
      %729 = vst [vmem:[#allocation2 + $0xc8] sm:$0xff] %v697
      %730 = vst [vmem:[#allocation2 + $0xd0] sm:$0xff] %v698
      %731 = vst [vmem:[#allocation2 + $0xd8] sm:$0xff] %v699
      %732 = vst [vmem:[#allocation2 + $0xe0] sm:$0xff] %v700
      %733 = vst [vmem:[#allocation2 + $0xe8] sm:$0xff] %v701
      %734 = vst [vmem:[#allocation2 + $0xf0] sm:$0xff] %v702
      %735 = vst [vmem:[#allocation2 + $0xf8] sm:$0xff] %v703
      // Predicated region
      $region41: #{basic_block_forward.3} parent=35 // pred_check
        %p736 = pneg %p319
      $region42: #{basic_block_forward.3} parent=35 // pred_check_branch
        %738 = sbr.rel (%p736) target = $region44
      $region43: #{basic_block_forward.3} parent=35 // pred_region
        %v739 = vld [vmem:[#allocation2] sm:$0xff]
        %v740 = vld [vmem:[#allocation2 + $0x8] sm:$0xff]
        %v741 = vld [vmem:[#allocation2 + $0x10] sm:$0xff]
        %v742 = vld [vmem:[#allocation2 + $0x18] sm:$0xff]
        %v743 = vld [vmem:[#allocation2 + $0x20] sm:$0xff]
        %v744 = vld [vmem:[#allocation2 + $0x28] sm:$0xff]
        %v745 = vld [vmem:[#allocation2 + $0x30] sm:$0xff]
        %v746 = vld [vmem:[#allocation2 + $0x38] sm:$0xff]
        %v747 = vld [vmem:[#allocation2 + $0x40] sm:$0xff]
        %v748 = vld [vmem:[#allocation2 + $0x48] sm:$0xff]
        %v749 = vld [vmem:[#allocation2 + $0x50] sm:$0xff]
        %v750 = vld [vmem:[#allocation2 + $0x58] sm:$0xff]
        %v751 = vld [vmem:[#allocation2 + $0x60] sm:$0xff]
        %v752 = vld [vmem:[#allocation2 + $0x68] sm:$0xff]
        %v753 = vld [vmem:[#allocation2 + $0x70] sm:$0xff]
        %v754 = vld [vmem:[#allocation2 + $0x78] sm:$0xff]
        %v755 = vld [vmem:[#allocation2 + $0x80] sm:$0xff]
        %v756 = vld [vmem:[#allocation2 + $0x88] sm:$0xff]
        %v757 = vld [vmem:[#allocation2 + $0x90] sm:$0xff]
        %v758 = vld [vmem:[#allocation2 + $0x98] sm:$0xff]
        %v759 = vld [vmem:[#allocation2 + $0xa0] sm:$0xff]
        %v760 = vld [vmem:[#allocation2 + $0xa8] sm:$0xff]
        %v761 = vld [vmem:[#allocation2 + $0xb0] sm:$0xff]
        %v762 = vld [vmem:[#allocation2 + $0xb8] sm:$0xff]
        %v763 = vld [vmem:[#allocation2 + $0xc0] sm:$0xff]
        %v764 = vld [vmem:[#allocation2 + $0xc8] sm:$0xff]
        %v765 = vld [vmem:[#allocation2 + $0xd0] sm:$0xff]
        %v766 = vld [vmem:[#allocation2 + $0xd8] sm:$0xff]
        %v767 = vld [vmem:[#allocation2 + $0xe0] sm:$0xff]
        %v768 = vld [vmem:[#allocation2 + $0xe8] sm:$0xff]
        %v769 = vld [vmem:[#allocation2 + $0xf0] sm:$0xff]
        %v770 = vld [vmem:[#allocation2 + $0xf8] sm:$0xff]
        %v771 = vld [vmem:[%s308] sm:$0xf]
        %v772 = vld [vmem:[%s308 + $0x4] sm:$0xf]
        %v773 = vld [vmem:[%s308 + $0x8] sm:$0xf]
        %v774 = vld [vmem:[%s308 + $0xc] sm:$0xf]
        %v775 = vld [vmem:[%s308 + $0x10] sm:$0xf]
        %v776 = vld [vmem:[%s308 + $0x14] sm:$0xf]
        %v777 = vld [vmem:[%s308 + $0x18] sm:$0xf]
        %v778 = vld [vmem:[%s308 + $0x1c] sm:$0xf]
        %v779 = vld [vmem:[%s308 + $0x20] sm:$0xf]
        %v780 = vld [vmem:[%s308 + $0x24] sm:$0xf]
        %v781 = vld [vmem:[%s308 + $0x28] sm:$0xf]
        %v782 = vld [vmem:[%s308 + $0x2c] sm:$0xf]
        %v783 = vld [vmem:[%s308 + $0x30] sm:$0xf]
        %v784 = vld [vmem:[%s308 + $0x34] sm:$0xf]
        %v785 = vld [vmem:[%s308 + $0x38] sm:$0xf]
        %v786 = vld [vmem:[%s308 + $0x3c] sm:$0xf]
        %v787 = vld [vmem:[%s308 + $0x40] sm:$0xf]
        %v788 = vld [vmem:[%s308 + $0x44] sm:$0xf]
        %v789 = vld [vmem:[%s308 + $0x48] sm:$0xf]
        %v790 = vld [vmem:[%s308 + $0x4c] sm:$0xf]
        %v791 = vld [vmem:[%s308 + $0x50] sm:$0xf]
        %v792 = vld [vmem:[%s308 + $0x54] sm:$0xf]
        %v793 = vld [vmem:[%s308 + $0x58] sm:$0xf]
        %v794 = vld [vmem:[%s308 + $0x5c] sm:$0xf]
        %v795 = vld [vmem:[%s308 + $0x60] sm:$0xf]
        %v796 = vld [vmem:[%s308 + $0x64] sm:$0xf]
        %v797 = vld [vmem:[%s308 + $0x68] sm:$0xf]
        %v798 = vld [vmem:[%s308 + $0x6c] sm:$0xf]
        %v799 = vld [vmem:[%s308 + $0x70] sm:$0xf]
        %v800 = vld [vmem:[%s308 + $0x74] sm:$0xf]
        %v801 = vld [vmem:[%s308 + $0x78] sm:$0xf]
        %v802 = vld [vmem:[%s308 + $0x7c] sm:$0xf]
        %v803 = vunpack.c.l.bf16 %v771
        %v804 = vunpack.c.l.bf16 %v772
        %v805 = vunpack.c.l.bf16 %v773
        %v806 = vunpack.c.l.bf16 %v774
        %v807 = vunpack.c.l.bf16 %v775
        %v808 = vunpack.c.l.bf16 %v776
        %v809 = vunpack.c.l.bf16 %v777
        %v810 = vunpack.c.l.bf16 %v778
        %v811 = vunpack.c.l.bf16 %v779
        %v812 = vunpack.c.l.bf16 %v780
        %v813 = vunpack.c.l.bf16 %v781
        %v814 = vunpack.c.l.bf16 %v782
        %v815 = vunpack.c.l.bf16 %v783
        %v816 = vunpack.c.l.bf16 %v784
        %v817 = vunpack.c.l.bf16 %v785
        %v818 = vunpack.c.l.bf16 %v786
        %v819 = vunpack.c.l.bf16 %v787
        %v820 = vunpack.c.l.bf16 %v788
        %v821 = vunpack.c.l.bf16 %v789
        %v822 = vunpack.c.l.bf16 %v790
        %v823 = vunpack.c.l.bf16 %v791
        %v824 = vunpack.c.l.bf16 %v792
        %v825 = vunpack.c.l.bf16 %v793
        %v826 = vunpack.c.l.bf16 %v794
        %v827 = vunpack.c.l.bf16 %v795
        %v828 = vunpack.c.l.bf16 %v796
        %v829 = vunpack.c.l.bf16 %v797
        %v830 = vunpack.c.l.bf16 %v798
        %v831 = vunpack.c.l.bf16 %v799
        %v832 = vunpack.c.l.bf16 %v800
        %v833 = vunpack.c.l.bf16 %v801
        %v834 = vunpack.c.l.bf16 %v802
        %v835 = vadd.f32 %v739, %v803
        %v836 = vadd.f32 %v740, %v804
        %v837 = vadd.f32 %v741, %v805
        %v838 = vadd.f32 %v742, %v806
        %v839 = vadd.f32 %v743, %v807
        %v840 = vadd.f32 %v744, %v808
        %v841 = vadd.f32 %v745, %v809
        %v842 = vadd.f32 %v746, %v810
        %v843 = vadd.f32 %v747, %v811
        %v844 = vadd.f32 %v748, %v812
        %v845 = vadd.f32 %v749, %v813
        %v846 = vadd.f32 %v750, %v814
        %v847 = vadd.f32 %v751, %v815
        %v848 = vadd.f32 %v752, %v816
        %v849 = vadd.f32 %v753, %v817
        %v850 = vadd.f32 %v754, %v818
        %v851 = vadd.f32 %v755, %v819
        %v852 = vadd.f32 %v756, %v820
        %v853 = vadd.f32 %v757, %v821
        %v854 = vadd.f32 %v758, %v822
        %v855 = vadd.f32 %v759, %v823
        %v856 = vadd.f32 %v760, %v824
        %v857 = vadd.f32 %v761, %v825
        %v858 = vadd.f32 %v762, %v826
        %v859 = vadd.f32 %v763, %v827
        %v860 = vadd.f32 %v764, %v828
        %v861 = vadd.f32 %v765, %v829
        %v862 = vadd.f32 %v766, %v830
        %v863 = vadd.f32 %v767, %v831
        %v864 = vadd.f32 %v768, %v832
        %v865 = vadd.f32 %v769, %v833
        %v866 = vadd.f32 %v770, %v834
        %v867 = vmax.f32 %v835, 0.0
        %v868 = vmax.f32 %v836, 0.0
        %v869 = vmax.f32 %v837, 0.0
        %v870 = vmax.f32 %v838, 0.0
        %v871 = vmax.f32 %v839, 0.0
        %v872 = vmax.f32 %v840, 0.0
        %v873 = vmax.f32 %v841, 0.0
        %v874 = vmax.f32 %v842, 0.0
        %v875 = vmax.f32 %v843, 0.0
        %v876 = vmax.f32 %v844, 0.0
        %v877 = vmax.f32 %v845, 0.0
        %v878 = vmax.f32 %v846, 0.0
        %v879 = vmax.f32 %v847, 0.0
        %v880 = vmax.f32 %v848, 0.0
        %v881 = vmax.f32 %v849, 0.0
        %v882 = vmax.f32 %v850, 0.0
        %v883 = vmax.f32 %v851, 0.0
        %v884 = vmax.f32 %v852, 0.0
        %v885 = vmax.f32 %v853, 0.0
        %v886 = vmax.f32 %v854, 0.0
        %v887 = vmax.f32 %v855, 0.0
        %v888 = vmax.f32 %v856, 0.0
        %v889 = vmax.f32 %v857, 0.0
        %v890 = vmax.f32 %v858, 0.0
        %v891 = vmax.f32 %v859, 0.0
        %v892 = vmax.f32 %v860, 0.0
        %v893 = vmax.f32 %v861, 0.0
        %v894 = vmax.f32 %v862, 0.0
        %v895 = vmax.f32 %v863, 0.0
        %v896 = vmax.f32 %v864, 0.0
        %v897 = vmax.f32 %v865, 0.0
        %v898 = vmax.f32 %v866, 0.0
        %899 = vst [vmem:[%s317] sm:$0xff] %v867
        %900 = vst [vmem:[%s317 + $0x8] sm:$0xff] %v868
        %901 = vst [vmem:[%s317 + $0x10] sm:$0xff] %v869
        %902 = vst [vmem:[%s317 + $0x18] sm:$0xff] %v870
        %903 = vst [vmem:[%s317 + $0x20] sm:$0xff] %v871
        %904 = vst [vmem:[%s317 + $0x28] sm:$0xff] %v872
        %905 = vst [vmem:[%s317 + $0x30] sm:$0xff] %v873
        %906 = vst [vmem:[%s317 + $0x38] sm:$0xff] %v874
        %907 = vst [vmem:[%s317 + $0x40] sm:$0xff] %v875
        %908 = vst [vmem:[%s317 + $0x48] sm:$0xff] %v876
        %909 = vst [vmem:[%s317 + $0x50] sm:$0xff] %v877
        %910 = vst [vmem:[%s317 + $0x58] sm:$0xff] %v878
        %911 = vst [vmem:[%s317 + $0x60] sm:$0xff] %v879
        %912 = vst [vmem:[%s317 + $0x68] sm:$0xff] %v880
        %913 = vst [vmem:[%s317 + $0x70] sm:$0xff] %v881
        %914 = vst [vmem:[%s317 + $0x78] sm:$0xff] %v882
        %915 = vst [vmem:[%s317 + $0x80] sm:$0xff] %v883
        %916 = vst [vmem:[%s317 + $0x88] sm:$0xff] %v884
        %917 = vst [vmem:[%s317 + $0x90] sm:$0xff] %v885
        %918 = vst [vmem:[%s317 + $0x98] sm:$0xff] %v886
        %919 = vst [vmem:[%s317 + $0xa0] sm:$0xff] %v887
        %920 = vst [vmem:[%s317 + $0xa8] sm:$0xff] %v888
        %921 = vst [vmem:[%s317 + $0xb0] sm:$0xff] %v889
        %922 = vst [vmem:[%s317 + $0xb8] sm:$0xff] %v890
        %923 = vst [vmem:[%s317 + $0xc0] sm:$0xff] %v891
        %924 = vst [vmem:[%s317 + $0xc8] sm:$0xff] %v892
        %925 = vst [vmem:[%s317 + $0xd0] sm:$0xff] %v893
        %926 = vst [vmem:[%s317 + $0xd8] sm:$0xff] %v894
        %927 = vst [vmem:[%s317 + $0xe0] sm:$0xff] %v895
        %928 = vst [vmem:[%s317 + $0xe8] sm:$0xff] %v896
        %929 = vst [vmem:[%s317 + $0xf0] sm:$0xff] %v897
        %930 = vst [vmem:[%s317 + $0xf8] sm:$0xff] %v898
      $region44: #{basic_block_forward.3} parent=35 // pred_fallthru
        _
      %s931 = smul.u32 32, %s20
      %p932 = scmp.lt.s32.totalorder %s931, 63
      %s933 = scalar_select %p932, %s931, 63
      %p934 = scmp.lt.s32.totalorder %s21, 0
      %s935 = scalar_select %p934, %s21, 0
      %s936 = sadd.s32 %s935, %s933
      %s937 = smul.addr %s936, 8
      %s938 = scalar_lea.vmem %s4, %s937
      // Predicated region
      $region45: #{basic_block_forward.3} parent=35 // pred_check
        %p939 = pneg %p164
      $region46: #{basic_block_forward.3} parent=35 // pred_check_branch
        %941 = sbr.rel (%p939) target = $region48
      $region47: #{basic_block_forward.3} parent=35 // pred_region
        %s942 = smul.u32 32, %s20
      $region48: #{basic_block_forward.3} parent=35 // pred_fallthru
        _
    $region36: #{basic_block_forward.3} parent=5 // pred_fallthru
      _
    %p943 = scmp.le.s32.totalorder 2, %s10
    // Predicated region
    $region49: #{basic_block_forward.3} parent=5 // pred_check
      %p944 = pneg %p943
    $region50: #{basic_block_forward.3} parent=5 // pred_check_branch
      %946 = sbr.rel (%p944) target = $region52
    $region51: #{basic_block_forward.3} parent=5 // pred_region
      %s947 = ssub.s32 %s10, 2
      // Predicated region
      $region53: #{basic_block_forward.3} parent=51 // pred_check
        %p948 = pneg %p170
      $region54: #{basic_block_forward.3} parent=51 // pred_check_branch
        %950 = sbr.rel (%p948) target = $region56
      $region55: #{basic_block_forward.3} parent=51 // pred_region
        %s951 = smul.u32 32, %s23
        %p952 = scmp.lt.s32.totalorder %s951, 63
        %s953 = scalar_select %p952, %s951, 63
        %p954 = scmp.lt.s32.totalorder %s24, 0
        %s955 = scalar_select %p954, %s24, 0
        %s956 = sadd.s32 %s955, %s953
        %s957 = smul.addr %s956, 8
        %s958 = scalar_lea.vmem %s4, %s957
      $region56: #{basic_block_forward.3} parent=51 // pred_fallthru
        _
    $region52: #{basic_block_forward.3} parent=5 // pred_fallthru
      _
  $region6: #{basic_block_forward.3} parent=0 // loop_footer
    %s14 = sadd.s32 1, %s10
  $region7: #{basic_block_forward.3} parent=0 // loop_footer_branch
    %9 = sbr.rel target = $region3
  $region8: #{basic_block_forward.3} parent=0 // loop_exit
    _

// kernel: basic_block_forward.2
$region0: #{basic_block_forward.2}
  #allocation0 [shape = 'u32[]', space=smem, size = 0x4, offset = 0x4, fixed_abs, tag = 'smem constant byte address 0x4 - core index']
  #allocation1 [shape = 'u32[72,128]{1,0:T(1,128)}', space=vmem, size = 0x9000, scoped, tag = 'internal scratch']
  #allocation2 [shape = 'f32[256,128]{1,0:T(8,128)}', space=vmem, size = 0x20000, scoped, tag = 'scratch operand']
  %s0 = inlined_call_operand.vmem [shape: bf16[512,128], index: 0, kind: input, shape index: {}]
  %s1 = inlined_call_operand.vmem [shape: bf16[128,128], index: 1, kind: input, shape index: {}]
  %s2 = inlined_call_operand.vmem [shape: f32[1,128], index: 2, kind: input, shape index: {}]
  %s3 = inlined_call_operand.vmem [shape: bf16[512,128], index: 3, kind: output, shape index: {}]
  %s4 = sld [smem:[#allocation0]]
  $region53: #{basic_block_forward.2} parent=0
    _
  %s6 = ssub.s32 1, %s4
  %s7 = scalar_select 0, %s6, %s4
  loop: start=0, step=1, limit=4
  $region2: #{basic_block_forward.2} parent=0 // loop_pre_header
    _
  $region3: #{basic_block_forward.2} parent=0 // loop_header
    %s9 = sphi 0, %s13
    %p10 = scmp.ge.s32.totalorder %s9, 4
    %s16 = sphi 0, %s35
    %s17 = sphi 0, %s31
    %s18 = sphi 0, %s27
    %s19 = sphi 0, %s16
    %s20 = sphi 0, %s17
    %s21 = sphi 0, %s18
    %s22 = sphi 0, %s19
    %s23 = sphi 0, %s20
    %s24 = sphi 0, %s21
    %s40 = sphi 0, %s42
    %s43 = sphi 0, %s40
    %s44 = sphi 0, %s43
    %s60 = sphi 0, %s44
    %s68 = sphi 0, %s70
    %s71 = sphi 0, %s68
    %s72 = sphi 0, %s71
    %s88 = sphi 0, %s72
    %s94 = sphi 0, %s96
    %s97 = sphi 0, %s94
    %s98 = sphi 0, %s97
    %s114 = sphi 0, %s98
    %s122 = sphi 0, %s124
    %s125 = sphi 0, %s122
    %s126 = sphi 0, %s125
    %s142 = sphi 0, %s126
  $region4: #{basic_block_forward.2} parent=0 // loop_header_branch
    %12 = sbr.rel (%p10) target = $region8
  $region5: #{basic_block_forward.2} parent=0 // loop_body
    %s14 = ssub.s32 %s9, 1
    %s15 = ssub.s32 %s9, 2
    %s25 = sadd.s32 1, %s18
    %p26 = scmp.ge.s32.totalorder %s25, 1
    %s27 = scalar_select %p26, 0, %s25
    %s28 = sadd.s32 1, %s17
    %s29 = scalar_select %p26, %s28, %s17
    %p30 = scmp.ge.s32.totalorder %s29, 1
    %s31 = scalar_select %p30, 0, %s29
    %s32 = sadd.s32 1, %s16
    %s33 = scalar_select %p30, %s32, %s16
    %p34 = scmp.ge.s32.totalorder %s33, 2
    %s35 = scalar_select %p34, 0, %s33
    %s36 = ssub.s32 %s16, %s35
    %s37 = ssub.s32 %s18, %s27
    %s38 = sor.u32 %s36, %s37
    %p39 = scmp.eq.s32.totalorder %s38, 0
    %s41 = sadd.s32 %s40, 1
    %s42 = scalar_select %p39, %s40, %s41
    %p45 = pneg %p39
    %p46 = scmp.eq.s32.totalorder %s9, 1
    %p47 = por %p45, %p46
    %p48 = scmp.ne.s32.totalorder %s40, %s43
    %p49 = scmp.eq.s32.totalorder %s9, 0
    %p50 = por %p48, %p49
    %p51 = scmp.ne.s32.totalorder %s40, %s43
    %p52 = scmp.eq.s32.totalorder %s14, 1
    %p53 = por %p51, %p52
    %p54 = scmp.ne.s32.totalorder %s43, %s44
    %p55 = scmp.eq.s32.totalorder %s14, 0
    %p56 = por %p54, %p55
    %p57 = scmp.ne.s32.totalorder %s43, %s44
    %p58 = scmp.eq.s32.totalorder %s15, 1
    %p59 = por %p57, %p58
    %p61 = scmp.ne.s32.totalorder %s44, %s60
    %p62 = scmp.eq.s32.totalorder %s15, 0
    %p63 = por %p61, %p62
    %s64 = ssub.s32 %s18, %s27
    %s65 = ssub.s32 %s17, %s31
    %s66 = sor.u32 %s64, %s65
    %p67 = scmp.eq.s32.totalorder %s66, 0
    %s69 = sadd.s32 %s68, 1
    %s70 = scalar_select %p67, %s68, %s69
    %p73 = pneg %p67
    %p74 = scmp.eq.s32.totalorder %s9, 1
    %p75 = por %p73, %p74
    %p76 = scmp.ne.s32.totalorder %s68, %s71
    %p77 = scmp.eq.s32.totalorder %s9, 0
    %p78 = por %p76, %p77
    %p79 = scmp.ne.s32.totalorder %s68, %s71
    %p80 = scmp.eq.s32.totalorder %s14, 1
    %p81 = por %p79, %p80
    %p82 = scmp.ne.s32.totalorder %s71, %s72
    %p83 = scmp.eq.s32.totalorder %s14, 0
    %p84 = por %p82, %p83
    %p85 = scmp.ne.s32.totalorder %s71, %s72
    %p86 = scmp.eq.s32.totalorder %s15, 1
    %p87 = por %p85, %p86
    %p89 = scmp.ne.s32.totalorder %s72, %s88
    %p90 = scmp.eq.s32.totalorder %s15, 0
    %p91 = por %p89, %p90
    %s92 = ssub.s32 %s17, %s31
    %p93 = scmp.eq.s32.totalorder %s92, 0
    %s95 = sadd.s32 %s94, 1
    %s96 = scalar_select %p93, %s94, %s95
    %p99 = pneg %p93
    %p100 = scmp.eq.s32.totalorder %s9, 1
    %p101 = por %p99, %p100
    %p102 = scmp.ne.s32.totalorder %s94, %s97
    %p103 = scmp.eq.s32.totalorder %s9, 0
    %p104 = por %p102, %p103
    %p105 = scmp.ne.s32.totalorder %s94, %s97
    %p106 = scmp.eq.s32.totalorder %s14, 1
    %p107 = por %p105, %p106
    %p108 = scmp.ne.s32.totalorder %s97, %s98
    %p109 = scmp.eq.s32.totalorder %s14, 0
    %p110 = por %p108, %p109
    %p111 = scmp.ne.s32.totalorder %s97, %s98
    %p112 = scmp.eq.s32.totalorder %s15, 1
    %p113 = por %p111, %p112
    %p115 = scmp.ne.s32.totalorder %s98, %s114
    %p116 = scmp.eq.s32.totalorder %s15, 0
    %p117 = por %p115, %p116
    %s118 = ssub.s32 %s16, %s35
    %s119 = ssub.s32 %s17, %s31
    %s120 = sor.u32 %s118, %s119
    %p121 = scmp.eq.s32.totalorder %s120, 0
    %s123 = sadd.s32 %s122, 1
    %s124 = scalar_select %p121, %s122, %s123
    %p127 = pneg %p121
    %p128 = scmp.eq.s32.totalorder %s9, 1
    %p129 = por %p127, %p128
    %p130 = scmp.ne.s32.totalorder %s122, %s125
    %p131 = scmp.eq.s32.totalorder %s9, 0
    %p132 = por %p130, %p131
    %p133 = scmp.ne.s32.totalorder %s122, %s125
    %p134 = scmp.eq.s32.totalorder %s14, 1
    %p135 = por %p133, %p134
    %p136 = scmp.ne.s32.totalorder %s125, %s126
    %p137 = scmp.eq.s32.totalorder %s14, 0
    %p138 = por %p136, %p137
    %p139 = scmp.ne.s32.totalorder %s125, %s126
    %p140 = scmp.eq.s32.totalorder %s15, 1
    %p141 = por %p139, %p140
    %p143 = scmp.ne.s32.totalorder %s126, %s142
    %p144 = scmp.eq.s32.totalorder %s15, 0
    %p145 = por %p143, %p144
    %p146 = scmp.le.s32.totalorder 1, %s9
    %p147 = scmp.lt.s32.totalorder %s9, 3
    %p148 = pnand %p146, %p147
    %p149 = pneg %p148
    // Predicated region
    $region9: #{basic_block_forward.2} parent=5 // pred_check
      _
    $region10: #{basic_block_forward.2} parent=5 // pred_check_branch
      %151 = sbr.rel (%p148) target = $region12
    $region11: #{basic_block_forward.2} parent=5 // pred_region
      %s152 = ssub.s32 %s9, 1
      // Predicated region
      $region13: #{basic_block_forward.2} parent=11 // pred_check
        %p153 = pneg %p84
      $region14: #{basic_block_forward.2} parent=11 // pred_check_branch
        %155 = sbr.rel (%p153) target = $region16
      $region15: #{basic_block_forward.2} parent=11 // pred_region
        %s156 = smul.u32 16, %s21
        %p157 = scmp.lt.s32.totalorder %s156, 15
        %s158 = scalar_select %p157, %s156, 15
        %p159 = scmp.lt.s32.totalorder %s20, 0
        %s160 = scalar_select %p159, %s20, 0
        %s161 = sadd.s32 %s160, %s158
        %s162 = smul.addr %s161, 4
        %s163 = scalar_lea.vmem %s1, %s162
        %s164 = smul.u32 16, %s21
      $region16: #{basic_block_forward.2} parent=11 // pred_fallthru
        _
      // Predicated region
      $region17: #{basic_block_forward.2} parent=11 // pred_check
        %p165 = pneg %p110
      $region18: #{basic_block_forward.2} parent=11 // pred_check_branch
        %167 = sbr.rel (%p165) target = $region20
      $region19: #{basic_block_forward.2} parent=11 // pred_region
        %p168 = scmp.lt.s32.totalorder %s20, 0
        %s169 = scalar_select %p168, %s20, 0
        %s170 = scalar_lea.vmem %s2, %s169
      $region20: #{basic_block_forward.2} parent=11 // pred_fallthru
        _
    $region12: #{basic_block_forward.2} parent=5 // pred_fallthru
      _
    %p171 = scmp.lt.s32.totalorder %s9, 2
    // Predicated region
    $region21: #{basic_block_forward.2} parent=5 // pred_check
      %p172 = pneg %p171
    $region22: #{basic_block_forward.2} parent=5 // pred_check_branch
      %174 = sbr.rel (%p172) target = $region24
    $region23: #{basic_block_forward.2} parent=5 // pred_region
      // Predicated region
      $region25: #{basic_block_forward.2} parent=23 // pred_check
        %p175 = pneg %p50
      $region26: #{basic_block_forward.2} parent=23 // pred_check_branch
        %177 = sbr.rel (%p175) target = $region28
      $region27: #{basic_block_forward.2} parent=23 // pred_region
        %s178 = smul.u32 32, %s16
        %p179 = scmp.lt.s32.totalorder %s178, 63
        %s180 = scalar_select %p179, %s178, 63
        %p181 = scmp.lt.s32.totalorder %s18, 0
        %s182 = scalar_select %p181, %s18, 0
        %s183 = sadd.s32 %s182, %s180
        %s184 = smul.addr %s183, 4
        %s185 = scalar_lea.vmem %s0, %s184
        %s186 = smul.u32 32, %s16
      $region28: #{basic_block_forward.2} parent=23 // pred_fallthru
        _
    $region24: #{basic_block_forward.2} parent=5 // pred_fallthru
      _
    %p187 = scmp.le.s32.totalorder 1, %s9
    %p188 = scmp.lt.s32.totalorder %s9, 3
    %p189 = pnand %p187, %p188
    %p190 = pneg %p189
    // Predicated region
    $region29: #{basic_block_forward.2} parent=5 // pred_check
      _
    $region30: #{basic_block_forward.2} parent=5 // pred_check_branch
      %192 = sbr.rel (%p189) target = $region32
    $region31: #{basic_block_forward.2} parent=5 // pred_region
      %s193 = ssub.s32 %s9, 1
      %s194 = smul.u32 32, %s19
      %p195 = scmp.lt.s32.totalorder %s194, 63
      %s196 = scalar_select %p195, %s194, 63
      %p197 = scmp.lt.s32.totalorder %s21, 0
      %s198 = scalar_select %p197, %s21, 0
      %s199 = sadd.s32 %s198, %s196
      %s200 = smul.addr %s199, 4
      %s201 = scalar_lea.vmem %s0, %s200
      %p202 = pneg %p56
      %p203 = pneg %p53
      %s204 = smul.u32 16, %s21
      %p205 = scmp.lt.s32.totalorder %s204, 15
      %s206 = scalar_select %p205, %s204, 15
      %p207 = scmp.lt.s32.totalorder %s20, 0
      %s208 = scalar_select %p207, %s20, 0
      %s209 = sadd.s32 %s208, %s206
      %s210 = smul.addr %s209, 4
      %s211 = scalar_lea.vmem %s1, %s210
      %p212 = pneg %p84
      %p213 = pneg %p81
      %p214 = scmp.lt.s32.totalorder %s20, 0
      %s215 = scalar_select %p214, %s20, 0
      %s216 = scalar_lea.vmem %s2, %s215
      %p217 = pneg %p110
      %p218 = pneg %p107
      %p219 = pneg %p138
      %p220 = pneg %p135
      %s221 = smul.u32 32, %s19
      %p222 = scmp.lt.s32.totalorder %s221, 63
      %s223 = scalar_select %p222, %s221, 63
      %p224 = scmp.lt.s32.totalorder %s20, 0
      %s225 = scalar_select %p224, %s20, 0
      %s226 = sadd.s32 %s225, %s223
      %s227 = smul.addr %s226, 4
      %s228 = scalar_lea.vmem %s3, %s227
      %s229 = smul.u32 32, %s19
      %p230 = scmp.lt.s32.totalorder %s229, 63
      %s231 = scalar_select %p230, %s229, 63
      %p232 = scmp.lt.s32.totalorder %s21, 0
      %s233 = scalar_select %p232, %s21, 0
      %s234 = sadd.s32 %s233, %s231
      %s235 = smul.addr %s234, 4
      %s236 = scalar_lea.vmem %s0, %s235
      %s237 = smul.u32 32, %s19
      %s238 = smul.u32 16, %s21
      %p239 = scmp.lt.s32.totalorder %s238, 15
      %s240 = scalar_select %p239, %s238, 15
      %p241 = scmp.lt.s32.totalorder %s20, 0
      %s242 = scalar_select %p241, %s20, 0
      %s243 = sadd.s32 %s242, %s240
      %s244 = smul.addr %s243, 4
      %s245 = scalar_lea.vmem %s1, %s244
      %s246 = smul.u32 16, %s21
      %p247 = scmp.lt.s32.totalorder %s20, 0
      %s248 = scalar_select %p247, %s20, 0
      %s249 = scalar_lea.vmem %s2, %s248
      %s250 = smul.u32 32, %s19
      %p251 = scmp.lt.s32.totalorder %s250, 63
      %s252 = scalar_select %p251, %s250, 63
      %p253 = scmp.lt.s32.totalorder %s20, 0
      %s254 = scalar_select %p253, %s20, 0
      %s255 = sadd.s32 %s254, %s252
      %s256 = smul.addr %s255, 4
      %s257 = scalar_lea.vmem %s3, %s256
      %s258 = smul.u32 32, %s19
      %p259 = scmp.eq.s32.totalorder %s21, 0
      // Predicated region
      $region33: #{basic_block_forward.2} parent=31 // pred_check
        %p260 = pneg %p259
      $region34: #{basic_block_forward.2} parent=31 // pred_check_branch
        %262 = sbr.rel (%p260) target = $region36
      $region35: #{basic_block_forward.2} parent=31 // pred_region
        %v263 = vld [vmem:[%s249] sm:$0x1]
        %v265 = vperm.slane %v263, 0
        %267 = vst [vmem:[#allocation2] sm:$0xff] %v265
        %268 = vst [vmem:[#allocation2 + $0x8] sm:$0xff] %v265
        %269 = vst [vmem:[#allocation2 + $0x10] sm:$0xff] %v265
        %270 = vst [vmem:[#allocation2 + $0x18] sm:$0xff] %v265
        %271 = vst [vmem:[#allocation2 + $0x20] sm:$0xff] %v265
        %272 = vst [vmem:[#allocation2 + $0x28] sm:$0xff] %v265
        %273 = vst [vmem:[#allocation2 + $0x30] sm:$0xff] %v265
        %274 = vst [vmem:[#allocation2 + $0x38] sm:$0xff] %v265
        %275 = vst [vmem:[#allocation2 + $0x40] sm:$0xff] %v265
        %276 = vst [vmem:[#allocation2 + $0x48] sm:$0xff] %v265
        %277 = vst [vmem:[#allocation2 + $0x50] sm:$0xff] %v265
        %278 = vst [vmem:[#allocation2 + $0x58] sm:$0xff] %v265
        %279 = vst [vmem:[#allocation2 + $0x60] sm:$0xff] %v265
        %280 = vst [vmem:[#allocation2 + $0x68] sm:$0xff] %v265
        %281 = vst [vmem:[#allocation2 + $0x70] sm:$0xff] %v265
        %282 = vst [vmem:[#allocation2 + $0x78] sm:$0xff] %v265
        %283 = vst [vmem:[#allocation2 + $0x80] sm:$0xff] %v265
        %284 = vst [vmem:[#allocation2 + $0x88] sm:$0xff] %v265
        %285 = vst [vmem:[#allocation2 + $0x90] sm:$0xff] %v265
        %286 = vst [vmem:[#allocation2 + $0x98] sm:$0xff] %v265
        %287 = vst [vmem:[#allocation2 + $0xa0] sm:$0xff] %v265
        %288 = vst [vmem:[#allocation2 + $0xa8] sm:$0xff] %v265
        %289 = vst [vmem:[#allocation2 + $0xb0] sm:$0xff] %v265
        %290 = vst [vmem:[#allocation2 + $0xb8] sm:$0xff] %v265
        %291 = vst [vmem:[#allocation2 + $0xc0] sm:$0xff] %v265
        %292 = vst [vmem:[#allocation2 + $0xc8] sm:$0xff] %v265
        %293 = vst [vmem:[#allocation2 + $0xd0] sm:$0xff] %v265
        %294 = vst [vmem:[#allocation2 + $0xd8] sm:$0xff] %v265
        %295 = vst [vmem:[#allocation2 + $0xe0] sm:$0xff] %v265
        %296 = vst [vmem:[#allocation2 + $0xe8] sm:$0xff] %v265
        %297 = vst [vmem:[#allocation2 + $0xf0] sm:$0xff] %v265
        %298 = vst [vmem:[#allocation2 + $0xf8] sm:$0xff] %v265
      $region36: #{basic_block_forward.2} parent=31 // pred_fallthru
        _
      %v299 = vld [vmem:[#allocation2] sm:$0xff]
      %v300 = vld [vmem:[#allocation2 + $0x8] sm:$0xff]
      %v301 = vld [vmem:[#allocation2 + $0x10] sm:$0xff]
      %v302 = vld [vmem:[#allocation2 + $0x18] sm:$0xff]
      %v303 = vld [vmem:[#allocation2 + $0x20] sm:$0xff]
      %v304 = vld [vmem:[#allocation2 + $0x28] sm:$0xff]
      %v305 = vld [vmem:[#allocation2 + $0x30] sm:$0xff]
      %v306 = vld [vmem:[#allocation2 + $0x38] sm:$0xff]
      %v307 = vld [vmem:[#allocation2 + $0x40] sm:$0xff]
      %v308 = vld [vmem:[#allocation2 + $0x48] sm:$0xff]
      %v309 = vld [vmem:[#allocation2 + $0x50] sm:$0xff]
      %v310 = vld [vmem:[#allocation2 + $0x58] sm:$0xff]
      %v311 = vld [vmem:[#allocation2 + $0x60] sm:$0xff]
      %v312 = vld [vmem:[#allocation2 + $0x68] sm:$0xff]
      %v313 = vld [vmem:[#allocation2 + $0x70] sm:$0xff]
      %v314 = vld [vmem:[#allocation2 + $0x78] sm:$0xff]
      %v315 = vld [vmem:[#allocation2 + $0x80] sm:$0xff]
      %v316 = vld [vmem:[#allocation2 + $0x88] sm:$0xff]
      %v317 = vld [vmem:[#allocation2 + $0x90] sm:$0xff]
      %v318 = vld [vmem:[#allocation2 + $0x98] sm:$0xff]
      %v319 = vld [vmem:[#allocation2 + $0xa0] sm:$0xff]
      %v320 = vld [vmem:[#allocation2 + $0xa8] sm:$0xff]
      %v321 = vld [vmem:[#allocation2 + $0xb0] sm:$0xff]
      %v322 = vld [vmem:[#allocation2 + $0xb8] sm:$0xff]
      %v323 = vld [vmem:[#allocation2 + $0xc0] sm:$0xff]
      %v324 = vld [vmem:[#allocation2 + $0xc8] sm:$0xff]
      %v325 = vld [vmem:[#allocation2 + $0xd0] sm:$0xff]
      %v326 = vld [vmem:[#allocation2 + $0xd8] sm:$0xff]
      %v327 = vld [vmem:[#allocation2 + $0xe0] sm:$0xff]
      %v328 = vld [vmem:[#allocation2 + $0xe8] sm:$0xff]
      %v329 = vld [vmem:[#allocation2 + $0xf0] sm:$0xff]
      %v330 = vld [vmem:[#allocation2 + $0xf8] sm:$0xff]
      %v331 = vld [vmem:[%s236] sm:$0xf]
      %v332 = vld [vmem:[%s236 + $0x4] sm:$0xf]
      %v333 = vld [vmem:[%s236 + $0x8] sm:$0xf]
      %v334 = vld [vmem:[%s236 + $0xc] sm:$0xf]
      %v335 = vld [vmem:[%s236 + $0x10] sm:$0xf]
      %v336 = vld [vmem:[%s236 + $0x14] sm:$0xf]
      %v337 = vld [vmem:[%s236 + $0x18] sm:$0xf]
      %v338 = vld [vmem:[%s236 + $0x1c] sm:$0xf]
      %v339 = vld [vmem:[%s236 + $0x20] sm:$0xf]
      %v340 = vld [vmem:[%s236 + $0x24] sm:$0xf]
      %v341 = vld [vmem:[%s236 + $0x28] sm:$0xf]
      %v342 = vld [vmem:[%s236 + $0x2c] sm:$0xf]
      %v343 = vld [vmem:[%s236 + $0x30] sm:$0xf]
      %v344 = vld [vmem:[%s236 + $0x34] sm:$0xf]
      %v345 = vld [vmem:[%s236 + $0x38] sm:$0xf]
      %v346 = vld [vmem:[%s236 + $0x3c] sm:$0xf]
      %v347 = vld [vmem:[%s236 + $0x40] sm:$0xf]
      %v348 = vld [vmem:[%s236 + $0x44] sm:$0xf]
      %v349 = vld [vmem:[%s236 + $0x48] sm:$0xf]
      %v350 = vld [vmem:[%s236 + $0x4c] sm:$0xf]
      %v351 = vld [vmem:[%s236 + $0x50] sm:$0xf]
      %v352 = vld [vmem:[%s236 + $0x54] sm:$0xf]
      %v353 = vld [vmem:[%s236 + $0x58] sm:$0xf]
      %v354 = vld [vmem:[%s236 + $0x5c] sm:$0xf]
      %v355 = vld [vmem:[%s236 + $0x60] sm:$0xf]
      %v356 = vld [vmem:[%s236 + $0x64] sm:$0xf]
      %v357 = vld [vmem:[%s236 + $0x68] sm:$0xf]
      %v358 = vld [vmem:[%s236 + $0x6c] sm:$0xf]
      %v359 = vld [vmem:[%s236 + $0x70] sm:$0xf]
      %v360 = vld [vmem:[%s236 + $0x74] sm:$0xf]
      %v361 = vld [vmem:[%s236 + $0x78] sm:$0xf]
      %v362 = vld [vmem:[%s236 + $0x7c] sm:$0xf]
      %v363 = vld [vmem:[%s245] sm:$0xf]
      %v364 = vld [vmem:[%s245 + $0x4] sm:$0xf]
      %v365 = vld [vmem:[%s245 + $0x8] sm:$0xf]
      %v366 = vld [vmem:[%s245 + $0xc] sm:$0xf]
      %v367 = vld [vmem:[%s245 + $0x10] sm:$0xf]
      %v368 = vld [vmem:[%s245 + $0x14] sm:$0xf]
      %v369 = vld [vmem:[%s245 + $0x18] sm:$0xf]
      %v370 = vld [vmem:[%s245 + $0x1c] sm:$0xf]
      %v371 = vld [vmem:[%s245 + $0x20] sm:$0xf]
      %v372 = vld [vmem:[%s245 + $0x24] sm:$0xf]
      %v373 = vld [vmem:[%s245 + $0x28] sm:$0xf]
      %v374 = vld [vmem:[%s245 + $0x2c] sm:$0xf]
      %v375 = vld [vmem:[%s245 + $0x30] sm:$0xf]
      %v376 = vld [vmem:[%s245 + $0x34] sm:$0xf]
      %v377 = vld [vmem:[%s245 + $0x38] sm:$0xf]
      %v378 = vld [vmem:[%s245 + $0x3c] sm:$0xf]
      %v411 = vunpack.c.l.b16 %v331
      %v412 = vunpack.c.l.b16 %v332
      %v413 = vunpack.c.l.b16 %v333
      %v414 = vunpack.c.l.b16 %v334
      %v415 = vunpack.c.l.b16 %v335
      %v416 = vunpack.c.l.b16 %v336
      %v417 = vunpack.c.l.b16 %v337
      %v418 = vunpack.c.l.b16 %v338
      %v419 = vunpack.c.l.b16 %v339
      %v420 = vunpack.c.l.b16 %v340
      %v421 = vunpack.c.l.b16 %v341
      %v422 = vunpack.c.l.b16 %v342
      %v423 = vunpack.c.l.b16 %v343
      %v424 = vunpack.c.l.b16 %v344
      %v425 = vunpack.c.l.b16 %v345
      %v426 = vunpack.c.l.b16 %v346
      %v427 = vunpack.c.l.b16 %v347
      %v428 = vunpack.c.l.b16 %v348
      %v429 = vunpack.c.l.b16 %v349
      %v430 = vunpack.c.l.b16 %v350
      %v431 = vunpack.c.l.b16 %v351
      %v432 = vunpack.c.l.b16 %v352
      %v433 = vunpack.c.l.b16 %v353
      %v434 = vunpack.c.l.b16 %v354
      %v435 = vunpack.c.l.b16 %v355
      %v436 = vunpack.c.l.b16 %v356
      %v437 = vunpack.c.l.b16 %v357
      %v438 = vunpack.c.l.b16 %v358
      %v439 = vunpack.c.l.b16 %v359
      %v440 = vunpack.c.l.b16 %v360
      %v441 = vunpack.c.l.b16 %v361
      %v442 = vunpack.c.l.b16 %v362
      %v443 = vpack.c.b16 %v412, %v411
      %v444 = vpack.c.b16 %v414, %v413
      %v445 = vpack.c.b16 %v416, %v415
      %v446 = vpack.c.b16 %v418, %v417
      %v447 = vpack.c.b16 %v420, %v419
      %v448 = vpack.c.b16 %v422, %v421
      %v449 = vpack.c.b16 %v424, %v423
      %v450 = vpack.c.b16 %v426, %v425
      %v451 = vpack.c.b16 %v428, %v427
      %v452 = vpack.c.b16 %v430, %v429
      %v453 = vpack.c.b16 %v432, %v431
      %v454 = vpack.c.b16 %v434, %v433
      %v455 = vpack.c.b16 %v436, %v435
      %v456 = vpack.c.b16 %v438, %v437
      %v457 = vpack.c.b16 %v440, %v439
      %v458 = vpack.c.b16 %v442, %v441
      %v491 = vunpack.c.l.b16 %v363
      %v492 = vunpack.c.l.b16 %v364
      %v493 = vunpack.c.l.b16 %v365
      %v494 = vunpack.c.l.b16 %v366
      %v495 = vunpack.c.l.b16 %v367
      %v496 = vunpack.c.l.b16 %v368
      %v497 = vunpack.c.l.b16 %v369
      %v498 = vunpack.c.l.b16 %v370
      %v499 = vunpack.c.l.b16 %v371
      %v500 = vunpack.c.l.b16 %v372
      %v501 = vunpack.c.l.b16 %v373
      %v502 = vunpack.c.l.b16 %v374
      %v503 = vunpack.c.l.b16 %v375
      %v504 = vunpack.c.l.b16 %v376
      %v505 = vunpack.c.l.b16 %v377
      %v506 = vunpack.c.l.b16 %v378
      %v507 = vpack.c.b16 %v492, %v491
      %v508 = vpack.c.b16 %v494, %v493
      %v509 = vpack.c.b16 %v496, %v495
      %v510 = vpack.c.b16 %v498, %v497
      %v511 = vpack.c.b16 %v500, %v499
      %v512 = vpack.c.b16 %v502, %v501
      %v513 = vpack.c.b16 %v504, %v503
      %v514 = vpack.c.b16 %v506, %v505
      %523 = vmatpush.bf16.msra.mxu0 %v514
      %524 = vmatpush.bf16.msra.mxu0 %v513
      %525 = vmatpush.bf16.msra.mxu0 %v512
      %526 = vmatpush.bf16.msra.mxu0 %v511
      %527 = vmatpush.bf16.msra.mxu0 %v510
      %528 = vmatpush.bf16.msra.mxu0 %v509
      %529 = vmatpush.bf16.msra.mxu0 %v508
      %530 = vmatpush.bf16.msra.mxu0 %v507
      %531 = vmatmul.bf16.gmra.mxu0 %v443
      %v532 = vpop.f32.mrf.mxu0
      %v533 = vadd.f32 0.0, %v532
      %v534 = vpop.f32.mrf.mxu0
      %v535 = vadd.f32 0.0, %v534
      %536 = vmatmul.bf16.gmra.mxu0 %v444
      %v537 = vpop.f32.mrf.mxu0
      %v538 = vadd.f32 0.0, %v537
      %v539 = vpop.f32.mrf.mxu0
      %v540 = vadd.f32 0.0, %v539
      %541 = vmatmul.bf16.gmra.mxu0 %v445
      %v542 = vpop.f32.mrf.mxu0
      %v543 = vadd.f32 0.0, %v542
      %v544 = vpop.f32.mrf.mxu0
      %v545 = vadd.f32 0.0, %v544
      %546 = vmatmul.bf16.gmra.mxu0 %v446
      %v547 = vpop.f32.mrf.mxu0
      %v548 = vadd.f32 0.0, %v547
      %v549 = vpop.f32.mrf.mxu0
      %v550 = vadd.f32 0.0, %v549
      %551 = vmatmul.bf16.gmra.mxu0 %v447
      %v552 = vpop.f32.mrf.mxu0
      %v553 = vadd.f32 0.0, %v552
      %v554 = vpop.f32.mrf.mxu0
      %v555 = vadd.f32 0.0, %v554
      %556 = vmatmul.bf16.gmra.mxu0 %v448
      %v557 = vpop.f32.mrf.mxu0
      %v558 = vadd.f32 0.0, %v557
      %v559 = vpop.f32.mrf.mxu0
      %v560 = vadd.f32 0.0, %v559
      %561 = vmatmul.bf16.gmra.mxu0 %v449
      %v562 = vpop.f32.mrf.mxu0
      %v563 = vadd.f32 0.0, %v562
      %v564 = vpop.f32.mrf.mxu0
      %v565 = vadd.f32 0.0, %v564
      %566 = vmatmul.bf16.gmra.mxu0 %v450
      %v567 = vpop.f32.mrf.mxu0
      %v568 = vadd.f32 0.0, %v567
      %v569 = vpop.f32.mrf.mxu0
      %v570 = vadd.f32 0.0, %v569
      %571 = vmatmul.bf16.gmra.mxu0 %v451
      %v572 = vpop.f32.mrf.mxu0
      %v573 = vadd.f32 0.0, %v572
      %v574 = vpop.f32.mrf.mxu0
      %v575 = vadd.f32 0.0, %v574
      %576 = vmatmul.bf16.gmra.mxu0 %v452
      %v577 = vpop.f32.mrf.mxu0
      %v578 = vadd.f32 0.0, %v577
      %v579 = vpop.f32.mrf.mxu0
      %v580 = vadd.f32 0.0, %v579
      %581 = vmatmul.bf16.gmra.mxu0 %v453
      %v582 = vpop.f32.mrf.mxu0
      %v583 = vadd.f32 0.0, %v582
      %v584 = vpop.f32.mrf.mxu0
      %v585 = vadd.f32 0.0, %v584
      %586 = vmatmul.bf16.gmra.mxu0 %v454
      %v587 = vpop.f32.mrf.mxu0
      %v588 = vadd.f32 0.0, %v587
      %v589 = vpop.f32.mrf.mxu0
      %v590 = vadd.f32 0.0, %v589
      %591 = vmatmul.bf16.gmra.mxu0 %v455
      %v592 = vpop.f32.mrf.mxu0
      %v593 = vadd.f32 0.0, %v592
      %v594 = vpop.f32.mrf.mxu0
      %v595 = vadd.f32 0.0, %v594
      %596 = vmatmul.bf16.gmra.mxu0 %v456
      %v597 = vpop.f32.mrf.mxu0
      %v598 = vadd.f32 0.0, %v597
      %v599 = vpop.f32.mrf.mxu0
      %v600 = vadd.f32 0.0, %v599
      %601 = vmatmul.bf16.gmra.mxu0 %v457
      %v602 = vpop.f32.mrf.mxu0
      %v603 = vadd.f32 0.0, %v602
      %v604 = vpop.f32.mrf.mxu0
      %v605 = vadd.f32 0.0, %v604
      %606 = vmatmul.bf16.gmra.mxu0 %v458
      %v607 = vpop.f32.mrf.mxu0
      %v608 = vadd.f32 0.0, %v607
      %v609 = vpop.f32.mrf.mxu0
      %v610 = vadd.f32 0.0, %v609
      %611 = vdwg.mxu0
      %v612 = vadd.f32 %v299, %v533
      %v613 = vadd.f32 %v300, %v535
      %v614 = vadd.f32 %v301, %v538
      %v615 = vadd.f32 %v302, %v540
      %v616 = vadd.f32 %v303, %v543
      %v617 = vadd.f32 %v304, %v545
      %v618 = vadd.f32 %v305, %v548
      %v619 = vadd.f32 %v306, %v550
      %v620 = vadd.f32 %v307, %v553
      %v621 = vadd.f32 %v308, %v555
      %v622 = vadd.f32 %v309, %v558
      %v623 = vadd.f32 %v310, %v560
      %v624 = vadd.f32 %v311, %v563
      %v625 = vadd.f32 %v312, %v565
      %v626 = vadd.f32 %v313, %v568
      %v627 = vadd.f32 %v314, %v570
      %v628 = vadd.f32 %v315, %v573
      %v629 = vadd.f32 %v316, %v575
      %v630 = vadd.f32 %v317, %v578
      %v631 = vadd.f32 %v318, %v580
      %v632 = vadd.f32 %v319, %v583
      %v633 = vadd.f32 %v320, %v585
      %v634 = vadd.f32 %v321, %v588
      %v635 = vadd.f32 %v322, %v590
      %v636 = vadd.f32 %v323, %v593
      %v637 = vadd.f32 %v324, %v595
      %v638 = vadd.f32 %v325, %v598
      %v639 = vadd.f32 %v326, %v600
      %v640 = vadd.f32 %v327, %v603
      %v641 = vadd.f32 %v328, %v605
      %v642 = vadd.f32 %v329, %v608
      %v643 = vadd.f32 %v330, %v610
      %644 = vst [vmem:[#allocation2] sm:$0xff] %v612
      %645 = vst [vmem:[#allocation2 + $0x8] sm:$0xff] %v613
      %646 = vst [vmem:[#allocation2 + $0x10] sm:$0xff] %v614
      %647 = vst [vmem:[#allocation2 + $0x18] sm:$0xff] %v615
      %648 = vst [vmem:[#allocation2 + $0x20] sm:$0xff] %v616
      %649 = vst [vmem:[#allocation2 + $0x28] sm:$0xff] %v617
      %650 = vst [vmem:[#allocation2 + $0x30] sm:$0xff] %v618
      %651 = vst [vmem:[#allocation2 + $0x38] sm:$0xff] %v619
      %652 = vst [vmem:[#allocation2 + $0x40] sm:$0xff] %v620
      %653 = vst [vmem:[#allocation2 + $0x48] sm:$0xff] %v621
      %654 = vst [vmem:[#allocation2 + $0x50] sm:$0xff] %v622
      %655 = vst [vmem:[#allocation2 + $0x58] sm:$0xff] %v623
      %656 = vst [vmem:[#allocation2 + $0x60] sm:$0xff] %v624
      %657 = vst [vmem:[#allocation2 + $0x68] sm:$0xff] %v625
      %658 = vst [vmem:[#allocation2 + $0x70] sm:$0xff] %v626
      %659 = vst [vmem:[#allocation2 + $0x78] sm:$0xff] %v627
      %660 = vst [vmem:[#allocation2 + $0x80] sm:$0xff] %v628
      %661 = vst [vmem:[#allocation2 + $0x88] sm:$0xff] %v629
      %662 = vst [vmem:[#allocation2 + $0x90] sm:$0xff] %v630
      %663 = vst [vmem:[#allocation2 + $0x98] sm:$0xff] %v631
      %664 = vst [vmem:[#allocation2 + $0xa0] sm:$0xff] %v632
      %665 = vst [vmem:[#allocation2 + $0xa8] sm:$0xff] %v633
      %666 = vst [vmem:[#allocation2 + $0xb0] sm:$0xff] %v634
      %667 = vst [vmem:[#allocation2 + $0xb8] sm:$0xff] %v635
      %668 = vst [vmem:[#allocation2 + $0xc0] sm:$0xff] %v636
      %669 = vst [vmem:[#allocation2 + $0xc8] sm:$0xff] %v637
      %670 = vst [vmem:[#allocation2 + $0xd0] sm:$0xff] %v638
      %671 = vst [vmem:[#allocation2 + $0xd8] sm:$0xff] %v639
      %672 = vst [vmem:[#allocation2 + $0xe0] sm:$0xff] %v640
      %673 = vst [vmem:[#allocation2 + $0xe8] sm:$0xff] %v641
      %674 = vst [vmem:[#allocation2 + $0xf0] sm:$0xff] %v642
      %675 = vst [vmem:[#allocation2 + $0xf8] sm:$0xff] %v643
      // Predicated region
      $region37: #{basic_block_forward.2} parent=31 // pred_check
        %p676 = pneg %p259
      $region38: #{basic_block_forward.2} parent=31 // pred_check_branch
        %678 = sbr.rel (%p676) target = $region40
      $region39: #{basic_block_forward.2} parent=31 // pred_region
        %v679 = vld [vmem:[#allocation2] sm:$0xff]
        %v680 = vld [vmem:[#allocation2 + $0x8] sm:$0xff]
        %v681 = vld [vmem:[#allocation2 + $0x10] sm:$0xff]
        %v682 = vld [vmem:[#allocation2 + $0x18] sm:$0xff]
        %v683 = vld [vmem:[#allocation2 + $0x20] sm:$0xff]
        %v684 = vld [vmem:[#allocation2 + $0x28] sm:$0xff]
        %v685 = vld [vmem:[#allocation2 + $0x30] sm:$0xff]
        %v686 = vld [vmem:[#allocation2 + $0x38] sm:$0xff]
        %v687 = vld [vmem:[#allocation2 + $0x40] sm:$0xff]
        %v688 = vld [vmem:[#allocation2 + $0x48] sm:$0xff]
        %v689 = vld [vmem:[#allocation2 + $0x50] sm:$0xff]
        %v690 = vld [vmem:[#allocation2 + $0x58] sm:$0xff]
        %v691 = vld [vmem:[#allocation2 + $0x60] sm:$0xff]
        %v692 = vld [vmem:[#allocation2 + $0x68] sm:$0xff]
        %v693 = vld [vmem:[#allocation2 + $0x70] sm:$0xff]
        %v694 = vld [vmem:[#allocation2 + $0x78] sm:$0xff]
        %v695 = vld [vmem:[#allocation2 + $0x80] sm:$0xff]
        %v696 = vld [vmem:[#allocation2 + $0x88] sm:$0xff]
        %v697 = vld [vmem:[#allocation2 + $0x90] sm:$0xff]
        %v698 = vld [vmem:[#allocation2 + $0x98] sm:$0xff]
        %v699 = vld [vmem:[#allocation2 + $0xa0] sm:$0xff]
        %v700 = vld [vmem:[#allocation2 + $0xa8] sm:$0xff]
        %v701 = vld [vmem:[#allocation2 + $0xb0] sm:$0xff]
        %v702 = vld [vmem:[#allocation2 + $0xb8] sm:$0xff]
        %v703 = vld [vmem:[#allocation2 + $0xc0] sm:$0xff]
        %v704 = vld [vmem:[#allocation2 + $0xc8] sm:$0xff]
        %v705 = vld [vmem:[#allocation2 + $0xd0] sm:$0xff]
        %v706 = vld [vmem:[#allocation2 + $0xd8] sm:$0xff]
        %v707 = vld [vmem:[#allocation2 + $0xe0] sm:$0xff]
        %v708 = vld [vmem:[#allocation2 + $0xe8] sm:$0xff]
        %v709 = vld [vmem:[#allocation2 + $0xf0] sm:$0xff]
        %v710 = vld [vmem:[#allocation2 + $0xf8] sm:$0xff]
        %v711 = vmax.f32 %v679, 0.0
        %v712 = vmax.f32 %v680, 0.0
        %v713 = vmax.f32 %v681, 0.0
        %v714 = vmax.f32 %v682, 0.0
        %v715 = vmax.f32 %v683, 0.0
        %v716 = vmax.f32 %v684, 0.0
        %v717 = vmax.f32 %v685, 0.0
        %v718 = vmax.f32 %v686, 0.0
        %v719 = vmax.f32 %v687, 0.0
        %v720 = vmax.f32 %v688, 0.0
        %v721 = vmax.f32 %v689, 0.0
        %v722 = vmax.f32 %v690, 0.0
        %v723 = vmax.f32 %v691, 0.0
        %v724 = vmax.f32 %v692, 0.0
        %v725 = vmax.f32 %v693, 0.0
        %v726 = vmax.f32 %v694, 0.0
        %v727 = vmax.f32 %v695, 0.0
        %v728 = vmax.f32 %v696, 0.0
        %v729 = vmax.f32 %v697, 0.0
        %v730 = vmax.f32 %v698, 0.0
        %v731 = vmax.f32 %v699, 0.0
        %v732 = vmax.f32 %v700, 0.0
        %v733 = vmax.f32 %v701, 0.0
        %v734 = vmax.f32 %v702, 0.0
        %v735 = vmax.f32 %v703, 0.0
        %v736 = vmax.f32 %v704, 0.0
        %v737 = vmax.f32 %v705, 0.0
        %v738 = vmax.f32 %v706, 0.0
        %v739 = vmax.f32 %v707, 0.0
        %v740 = vmax.f32 %v708, 0.0
        %v741 = vmax.f32 %v709, 0.0
        %v742 = vmax.f32 %v710, 0.0
        %v743 = vpack.c.bf16 %v711, %v711
        %v744 = vpack.c.bf16 %v712, %v712
        %v745 = vpack.c.bf16 %v713, %v713
        %v746 = vpack.c.bf16 %v714, %v714
        %v747 = vpack.c.bf16 %v715, %v715
        %v748 = vpack.c.bf16 %v716, %v716
        %v749 = vpack.c.bf16 %v717, %v717
        %v750 = vpack.c.bf16 %v718, %v718
        %v751 = vpack.c.bf16 %v719, %v719
        %v752 = vpack.c.bf16 %v720, %v720
        %v753 = vpack.c.bf16 %v721, %v721
        %v754 = vpack.c.bf16 %v722, %v722
        %v755 = vpack.c.bf16 %v723, %v723
        %v756 = vpack.c.bf16 %v724, %v724
        %v757 = vpack.c.bf16 %v725, %v725
        %v758 = vpack.c.bf16 %v726, %v726
        %v759 = vpack.c.bf16 %v727, %v727
        %v760 = vpack.c.bf16 %v728, %v728
        %v761 = vpack.c.bf16 %v729, %v729
        %v762 = vpack.c.bf16 %v730, %v730
        %v763 = vpack.c.bf16 %v731, %v731
        %v764 = vpack.c.bf16 %v732, %v732
        %v765 = vpack.c.bf16 %v733, %v733
        %v766 = vpack.c.bf16 %v734, %v734
        %v767 = vpack.c.bf16 %v735, %v735
        %v768 = vpack.c.bf16 %v736, %v736
        %v769 = vpack.c.bf16 %v737, %v737
        %v770 = vpack.c.bf16 %v738, %v738
        %v771 = vpack.c.bf16 %v739, %v739
        %v772 = vpack.c.bf16 %v740, %v740
        %v773 = vpack.c.bf16 %v741, %v741
        %v774 = vpack.c.bf16 %v742, %v742
        %775 = vst [vmem:[%s257] sm:$0xf] %v743
        %776 = vst [vmem:[%s257 + $0x4] sm:$0xf] %v744
        %777 = vst [vmem:[%s257 + $0x8] sm:$0xf] %v745
        %778 = vst [vmem:[%s257 + $0xc] sm:$0xf] %v746
        %779 = vst [vmem:[%s257 + $0x10] sm:$0xf] %v747
        %780 = vst [vmem:[%s257 + $0x14] sm:$0xf] %v748
        %781 = vst [vmem:[%s257 + $0x18] sm:$0xf] %v749
        %782 = vst [vmem:[%s257 + $0x1c] sm:$0xf] %v750
        %783 = vst [vmem:[%s257 + $0x20] sm:$0xf] %v751
        %784 = vst [vmem:[%s257 + $0x24] sm:$0xf] %v752
        %785 = vst [vmem:[%s257 + $0x28] sm:$0xf] %v753
        %786 = vst [vmem:[%s257 + $0x2c] sm:$0xf] %v754
        %787 = vst [vmem:[%s257 + $0x30] sm:$0xf] %v755
        %788 = vst [vmem:[%s257 + $0x34] sm:$0xf] %v756
        %789 = vst [vmem:[%s257 + $0x38] sm:$0xf] %v757
        %790 = vst [vmem:[%s257 + $0x3c] sm:$0xf] %v758
        %791 = vst [vmem:[%s257 + $0x40] sm:$0xf] %v759
        %792 = vst [vmem:[%s257 + $0x44] sm:$0xf] %v760
        %793 = vst [vmem:[%s257 + $0x48] sm:$0xf] %v761
        %794 = vst [vmem:[%s257 + $0x4c] sm:$0xf] %v762
        %795 = vst [vmem:[%s257 + $0x50] sm:$0xf] %v763
        %796 = vst [vmem:[%s257 + $0x54] sm:$0xf] %v764
        %797 = vst [vmem:[%s257 + $0x58] sm:$0xf] %v765
        %798 = vst [vmem:[%s257 + $0x5c] sm:$0xf] %v766
        %799 = vst [vmem:[%s257 + $0x60] sm:$0xf] %v767
        %800 = vst [vmem:[%s257 + $0x64] sm:$0xf] %v768
        %801 = vst [vmem:[%s257 + $0x68] sm:$0xf] %v769
        %802 = vst [vmem:[%s257 + $0x6c] sm:$0xf] %v770
        %803 = vst [vmem:[%s257 + $0x70] sm:$0xf] %v771
        %804 = vst [vmem:[%s257 + $0x74] sm:$0xf] %v772
        %805 = vst [vmem:[%s257 + $0x78] sm:$0xf] %v773
        %806 = vst [vmem:[%s257 + $0x7c] sm:$0xf] %v774
      $region40: #{basic_block_forward.2} parent=31 // pred_fallthru
        _
      %s807 = smul.u32 32, %s19
      %p808 = scmp.lt.s32.totalorder %s807, 63
      %s809 = scalar_select %p808, %s807, 63
      %p810 = scmp.lt.s32.totalorder %s20, 0
      %s811 = scalar_select %p810, %s20, 0
      %s812 = sadd.s32 %s811, %s809
      %s813 = smul.addr %s812, 4
      %s814 = scalar_lea.vmem %s3, %s813
      // Predicated region
      $region41: #{basic_block_forward.2} parent=31 // pred_check
        %p815 = pneg %p135
      $region42: #{basic_block_forward.2} parent=31 // pred_check_branch
        %817 = sbr.rel (%p815) target = $region44
      $region43: #{basic_block_forward.2} parent=31 // pred_region
        %s818 = smul.u32 32, %s19
      $region44: #{basic_block_forward.2} parent=31 // pred_fallthru
        _
    $region32: #{basic_block_forward.2} parent=5 // pred_fallthru
      _
    %p819 = scmp.le.s32.totalorder 2, %s9
    // Predicated region
    $region45: #{basic_block_forward.2} parent=5 // pred_check
      %p820 = pneg %p819
    $region46: #{basic_block_forward.2} parent=5 // pred_check_branch
      %822 = sbr.rel (%p820) target = $region48
    $region47: #{basic_block_forward.2} parent=5 // pred_region
      %s823 = ssub.s32 %s9, 2
      // Predicated region
      $region49: #{basic_block_forward.2} parent=47 // pred_check
        %p824 = pneg %p141
      $region50: #{basic_block_forward.2} parent=47 // pred_check_branch
        %826 = sbr.rel (%p824) target = $region52
      $region51: #{basic_block_forward.2} parent=47 // pred_region
        %s827 = smul.u32 32, %s22
        %p828 = scmp.lt.s32.totalorder %s827, 63
        %s829 = scalar_select %p828, %s827, 63
        %p830 = scmp.lt.s32.totalorder %s23, 0
        %s831 = scalar_select %p830, %s23, 0
        %s832 = sadd.s32 %s831, %s829
        %s833 = smul.addr %s832, 4
        %s834 = scalar_lea.vmem %s3, %s833
      $region52: #{basic_block_forward.2} parent=47 // pred_fallthru
        _
    $region48: #{basic_block_forward.2} parent=5 // pred_fallthru
      _
  $region6: #{basic_block_forward.2} parent=0 // loop_footer
    %s13 = sadd.s32 1, %s9
  $region7: #{basic_block_forward.2} parent=0 // loop_footer_branch
    %8 = sbr.rel target = $region3
  $region8: #{basic_block_forward.2} parent=0 // loop_exit
    _

</llo_original>
